<compile_context>
chip_gen: v5e
topology: v5e:2x2
jax: 0.10.0
libtpu: 0.0.40
codegen_flags: <defaults>
</compile_context>

<pallas_src>
import math

import jax
import jax.numpy as jnp
import numpy as np
from jax.experimental import pallas as pl
from jax.experimental.pallas import tpu as pltpu

# ----------------------------- configuration -------------------------------
FILTER_SZ = 2
N_LC_IN = 6
N_LC_OUT = 8
LC_UPSAMPLE_FILT_SIZES = (4, 4)
LC_UPSAMPLE_STRIDES = (2, 2)
N_RES = 8
N_DIL = 8
N_SKP = 8
N_POST = 8
N_QUANT = 16
N_BLOCKS = 2
N_BLOCK_LAYERS = 3
N_SPEAKERS = 4
N_GLOBAL_EMBED = 4

B = 2
T_LC_SPARSE = 16                       # T2: sparse conditioning timesteps

# lc_conv (k=3, valid): 16 -> 14 ; up(4,2): 14 -> 26 ; up(4,2): 26 -> 50
# TODO(synk): trim_ups_out is set externally in the original model (via vconv
# bookkeeping); we fix a deterministic, shape-consistent value here.
TRIM_UPS_OUT = (2, 48)

DILATIONS = tuple(2 ** bl for _b in range(N_BLOCKS) for bl in range(N_BLOCK_LAYERS))
N_LAYERS = len(DILATIONS)              # 6
TOTAL_DIL = sum(DILATIONS)             # 14
T_COND = TRIM_UPS_OUT[1] - TRIM_UPS_OUT[0]   # 46 (== wav timesteps T1)
T_OUT = T_COND - TOTAL_DIL             # 32
N_COND = N_LC_OUT + N_GLOBAL_EMBED     # 12

# Fixed-size, right-aligned time slab (multiple of 8 sublanes).
T_PAD = 48
N_PAD_TOP = T_PAD - T_COND             # 2

# ----- lane-folded batch layout constants (batch elements side by side) -----
RL = B * N_RES                         # 16 residual lanes   [b0 | b1]
DL = B * N_DIL                         # 16 gated-z lanes
SL = B * N_SKP                         # 16 skip lanes
HL = B * N_POST                        # 16 post lanes
QL = B * N_QUANT                       # 32 quant lanes
PL = 2 * DL                            # 32 pre lanes [sig_b0|sig_b1|gate_b0|gate_b1]
IN_B = N_QUANT + N_COND                # 28 packed input lanes per batch element
KIN = B * IN_B + 1                     # 57 (+1 = constant-one lane carrying biases)
KIN_PAD = 64
NPRO = N_LAYERS * PL + RL              # 208 prologue output lanes
WL_ROWS = RL + DL                      # 32 rows per packed layer block
WL_COLS = 2 * PL                       # 64
POST_BIAS_ROW = max(SL, HL)            # 16

UNIQ_DILS = tuple(sorted(set(DILATIONS)))
S_IDX = tuple(UNIQ_DILS.index(d) for d in DILATIONS)

assert T_PAD % 8 == 0
assert N_PAD_TOP + TOTAL_DIL == T_PAD - T_OUT
assert max(DILATIONS) < T_PAD          # shift matrices cover any dilation < T_PAD


# --------------------------- parameter creation -----------------------------
def init_params(key):
    keys = iter(jax.random.split(key, 96))

    def w(shape, fan_in):
        return jax.random.normal(next(keys), shape, jnp.float32) / math.sqrt(fan_in)

    def bias(shape):
        return 0.1 * jax.random.normal(next(keys), shape, jnp.float32)

    p = {}
    # lc_conv: Conv1d(n_lc_in, n_lc_out, k=3)
    p['lc_conv_w'] = w((N_LC_OUT, N_LC_IN, 3), N_LC_IN * 3)
    p['lc_conv_b'] = bias((N_LC_OUT,))
    # Upsampling: ConvTranspose1d(n_lc_out, n_lc_out, filt, stride, pad=filt-stride)
    for i, (fsz, _stride) in enumerate(zip(LC_UPSAMPLE_FILT_SIZES, LC_UPSAMPLE_STRIDES)):
        p[f'up{i}_w'] = w((N_LC_OUT, N_LC_OUT, fsz), N_LC_OUT * fsz)  # (in, out, K)
        p[f'up{i}_b'] = bias((N_LC_OUT,))
    # Conditioning: Linear(n_speakers, n_global_embed)
    p['emb_w'] = w((N_GLOBAL_EMBED, N_SPEAKERS), N_SPEAKERS)
    p['emb_b'] = bias((N_GLOBAL_EMBED,))
    # base_layer: Conv1d(n_quant, n_res, 1)
    p['base_w'] = w((N_RES, N_QUANT, 1), N_QUANT)
    p['base_b'] = bias((N_RES,))
    # GRCC layers
    p['grcc'] = []
    for _dil in DILATIONS:
        g = {
            'sig_w': w((N_DIL, N_RES, FILTER_SZ), N_RES * FILTER_SZ),
            'sig_b': bias((N_DIL,)),
            'gate_w': w((N_DIL, N_RES, FILTER_SZ), N_RES * FILTER_SZ),
            'gate_b': bias((N_DIL,)),
            'ps_w': w((N_DIL, N_COND, 1), N_COND),
            'pg_w': w((N_DIL, N_COND, 1), N_COND),
            'dr_w': w((N_RES, N_DIL, 1), N_DIL),
            'ds_w': w((N_SKP, N_DIL, 1), N_DIL),
        }
        p['grcc'].append(g)
    # post layers
    p['p1_w'] = w((N_POST, N_SKP, 1), N_SKP)
    p['p1_b'] = bias((N_POST,))
    p['p2_w'] = w((N_QUANT, N_POST, 1), N_POST)
    p['p2_b'] = bias((N_QUANT,))
    return p


def make_kernel_params(p):
    """Pack torch-shaped weights into three fused, lane-folded-batch tensors.

    wpro: (KIN_PAD, NPRO) prologue weight.
        input rows per batch b: [wav (16) | cond (12)] at b*IN_B, plus a ones
        row (index B*IN_B) that carries every bias.
        output cols: [layer0 cond-proj+bias (32)] ... [layer5 (32)] [res init (16)]
        per layer the 32 cols are [sig_b0|sig_b1|0.5*gate_b0|0.5*gate_b1].
    wl: (N_LAYERS+1, WL_ROWS, WL_COLS) per-layer fused weights.
        rows 0:RL   = W01: both dilation taps, cols [W0 block (32) | W1 block (32)]
        rows RL:    = Wz : 0.5 * [res | skip] projection, cols 0:PL
        wl[N_LAYERS] = post block: p1 (rows 0:SL, cols 0:HL), p2 (rows 0:HL,
        cols PL:PL+QL), biases in row POST_BIAS_ROW.
    smat: (len(UNIQ_DILS), T_PAD, T_PAD) shift-by-dilation matrices
        (S_d @ x)[r] = x[r-d] for r >= d else 0.
    """
    f32 = np.float32

    # ---- prologue fused weight --------------------------------------------
    wpro = np.zeros((KIN_PAD, NPRO), f32)
    base_wT = np.asarray(p['base_w'])[:, :, 0].T              # (Q, R)
    base_b = np.asarray(p['base_b'])
    res_c0 = N_LAYERS * PL
    ones_r = B * IN_B
    for b in range(B):
        wav_r = b * IN_B
        cond_r = b * IN_B + N_QUANT
        wpro[wav_r:wav_r + N_QUANT, res_c0 + b * N_RES:res_c0 + (b + 1) * N_RES] = base_wT
        wpro[ones_r, res_c0 + b * N_RES:res_c0 + (b + 1) * N_RES] = base_b
        for i, g in enumerate(p['grcc']):
            sig_c = PL * i + b * N_DIL
            gate_c = PL * i + DL + b * N_DIL
            wpro[cond_r:cond_r + N_COND, sig_c:sig_c + N_DIL] = np.asarray(g['ps_w'])[:, :, 0].T
            wpro[cond_r:cond_r + N_COND, gate_c:gate_c + N_DIL] = 0.5 * np.asarray(g['pg_w'])[:, :, 0].T
            wpro[ones_r, sig_c:sig_c + N_DIL] = np.asarray(g['sig_b'])
            wpro[ones_r, gate_c:gate_c + N_DIL] = 0.5 * np.asarray(g['gate_b'])

    # ---- per-layer fused weights + post block ------------------------------
    wl = np.zeros((N_LAYERS + 1, WL_ROWS, WL_COLS), f32)
    for i, g in enumerate(p['grcc']):
        sw = np.asarray(g['sig_w'])
        gw = np.asarray(g['gate_w'])
        drT = np.asarray(g['dr_w'])[:, :, 0].T                # (N_DIL, N_RES)
        dsT = np.asarray(g['ds_w'])[:, :, 0].T                # (N_DIL, N_SKP)
        for b in range(B):
            xr = b * N_RES                                    # residual input rows, batch b
            zr = RL + b * N_DIL                               # z input rows, batch b
            sig_c = b * N_DIL
            gate_c = DL + b * N_DIL
            # W0 block (tap 0, shifted / earlier sample) -> cols 0:PL
            wl[i, xr:xr + N_RES, sig_c:sig_c + N_DIL] = sw[:, :, 0].T
            wl[i, xr:xr + N_RES, gate_c:gate_c + N_DIL] = 0.5 * gw[:, :, 0].T
            # W1 block (tap 1, current sample) -> cols PL:2*PL
            wl[i, xr:xr + N_RES, PL + sig_c:PL + sig_c + N_DIL] = sw[:, :, 1].T
            wl[i, xr:xr + N_RES, PL + gate_c:PL + gate_c + N_DIL] = 0.5 * gw[:, :, 1].T
            # Wz block (x0.5 absorbs the sigmoid half from the single-tanh trick)
            wl[i, zr:zr + N_DIL, b * N_RES:(b + 1) * N_RES] = 0.5 * drT
            wl[i, zr:zr + N_DIL, RL + b * N_SKP:RL + (b + 1) * N_SKP] = 0.5 * dsT

    p1T = np.asarray(p['p1_w'])[:, :, 0].T                    # (N_SKP, N_POST)
    p2T = np.asarray(p['p2_w'])[:, :, 0].T                    # (N_POST, N_QUANT)
    for b in range(B):
        wl[N_LAYERS, b * N_SKP:(b + 1) * N_SKP, b * N_POST:(b + 1) * N_POST] = p1T
        wl[N_LAYERS, POST_BIAS_ROW, b * N_POST:(b + 1) * N_POST] = np.asarray(p['p1_b'])
        wl[N_LAYERS, b * N_POST:(b + 1) * N_POST,
           PL + b * N_QUANT:PL + (b + 1) * N_QUANT] = p2T
        wl[N_LAYERS, POST_BIAS_ROW, PL + b * N_QUANT:PL + (b + 1) * N_QUANT] = np.asarray(p['p2_b'])

    # ---- shift-by-dilation matrices ----------------------------------------
    smat = np.zeros((len(UNIQ_DILS), T_PAD, T_PAD), f32)
    for k, d in enumerate(UNIQ_DILS):
        smat[k, np.arange(d, T_PAD), np.arange(0, T_PAD - d)] = 1.0

    return {'wpro': jnp.asarray(wpro), 'wl': jnp.asarray(wl), 'smat': jnp.asarray(smat)}


# ----------------------------- plain-JAX glue --------------------------------
def jitter_gather(lc_sparse, jitter_index):
    """torch.take semantics: gather from the flattened lc_sparse."""
    # TODO(synk): jitter_index here is channel-broadcast (as in the module's
    # unsqueeze(1).expand), so all channels gather the same flat indices.
    Bsz, D1, _T2 = lc_sparse.shape
    lc_flat = lc_sparse.reshape(-1)
    idx = jnp.broadcast_to(jitter_index[:, None, :], (Bsz, D1, jitter_index.shape[1]))
    return lc_flat[idx]                                        # (B, n_lc_in, T2)


# ---- channel-last (NWC) conditioning path used by the Pallas forward --------
def conv1d_nwc(x_tc, w_oik, b=None, dilation=1):
    w = jnp.transpose(w_oik, (2, 1, 0))                        # (K, Cin, Cout)
    out = jax.lax.conv_general_dilated(
        x_tc, w, window_strides=(1,), padding='VALID', rhs_dilation=(dilation,),
        dimension_numbers=('NHC', 'HIO', 'NHC'),
        precision=jax.lax.Precision.HIGHEST)
    if b is not None:
        out = out + b[None, None, :]
    return out


def conv_transpose1d_nwc(x_tc, w_iok, b, stride, padding):
    K = w_iok.shape[-1]
    w = jnp.transpose(jnp.flip(w_iok, axis=-1), (2, 0, 1))     # (K, Cin, Cout)
    out = jax.lax.conv_general_dilated(
        x_tc, w, window_strides=(1,),
        padding=[(K - 1 - padding, K - 1 - padding)],
        lhs_dilation=(stride,), dimension_numbers=('NHC', 'HIO', 'NHC'),
        precision=jax.lax.Precision.HIGHEST)
    if b is not None:
        out = out + b[None, None, :]
    return out


def preprocess_cond_tc(p, lc_sparse, speaker_inds, jitter_index):
    """Channel-last conditioning path -> (B, T_COND, N_COND)."""
    Bsz = lc_sparse.shape[0]
    lc_jitter = jitter_gather(lc_sparse, jitter_index)         # (B, n_lc_in, T2)
    lc = jnp.transpose(lc_jitter, (0, 2, 1))                   # tiny -> (B, T2, n_lc_in)
    lc = conv1d_nwc(lc, p['lc_conv_w'], p['lc_conv_b'])
    for i, (fsz, stride) in enumerate(zip(LC_UPSAMPLE_FILT_SIZES, LC_UPSAMPLE_STRIDES)):
        lc = conv_transpose1d_nwc(lc, p[f'up{i}_w'], p[f'up{i}_b'], stride,
                                  padding=fsz - stride)
    lc_trim = lc[:, TRIM_UPS_OUT[0]:TRIM_UPS_OUT[1], :]        # (B, T_COND, n_lc_out)
    one_hot = jnp.eye(N_SPEAKERS, dtype=jnp.float32)[speaker_inds]
    gc = one_hot @ p['emb_w'].T + p['emb_b']                   # (B, G)
    gc_rep = jnp.broadcast_to(gc[:, None, :], (Bsz, T_COND, N_GLOBAL_EMBED))
    return jnp.concatenate([lc_trim, gc_rep], axis=-1)         # (B, T_COND, N_COND)


# ---- NCW path used only by the pure-JAX reference ---------------------------
def conv1d(x, w, b=None, dilation=1):
    out = jax.lax.conv_general_dilated(
        x, w, window_strides=(1,), padding='VALID', rhs_dilation=(dilation,),
        dimension_numbers=('NCH', 'OIH', 'NCH'),
        precision=jax.lax.Precision.HIGHEST)
    if b is not None:
        out = out + b[None, :, None]
    return out


def conv_transpose1d(x, w, b, stride, padding):
    K = w.shape[-1]
    w_conv = jnp.flip(w, axis=-1).transpose(1, 0, 2)           # (Cout, Cin, K)
    out = jax.lax.conv_general_dilated(
        x, w_conv, window_strides=(1,),
        padding=[(K - 1 - padding, K - 1 - padding)],
        lhs_dilation=(stride,), dimension_numbers=('NCH', 'OIH', 'NCH'),
        precision=jax.lax.Precision.HIGHEST)
    if b is not None:
        out = out + b[None, :, None]
    return out


def preprocess_cond_ncw(p, lc_sparse, speaker_inds, jitter_index):
    Bsz = lc_sparse.shape[0]
    lc_jitter = jitter_gather(lc_sparse, jitter_index)
    lc = conv1d(lc_jitter, p['lc_conv_w'], p['lc_conv_b'])
    for i, (fsz, stride) in enumerate(zip(LC_UPSAMPLE_FILT_SIZES, LC_UPSAMPLE_STRIDES)):
        lc = conv_transpose1d(lc, p[f'up{i}_w'], p[f'up{i}_b'], stride, padding=fsz - stride)
    lc_dense_trim = lc[:, :, TRIM_UPS_OUT[0]:TRIM_UPS_OUT[1]]
    one_hot = jnp.eye(N_SPEAKERS, dtype=jnp.float32)[speaker_inds]
    gc = one_hot @ p['emb_w'].T + p['emb_b']
    gc_rep = jnp.broadcast_to(gc[:, :, None],
                              (Bsz, N_GLOBAL_EMBED, lc_dense_trim.shape[2]))
    return jnp.concatenate([lc_dense_trim, gc_rep], axis=1)    # (B, n_cond, T_COND)


# ------------------------------ Pallas kernel --------------------------------
def _wavenet_stack_kernel(xin_ref, wpro_ref, wl_ref, smat_ref, out_ref):
    f32 = jnp.float32
    # Prologue: base 1x1 conv + every layer's conditioning projection + every
    # bias fused into ONE wide MXU matmul (48,64)@(64,208).
    pro = jnp.dot(xin_ref[...], wpro_ref[...], preferred_element_type=f32)
    x = pro[:, N_LAYERS * PL:]             # (T_PAD, RL) residual, lives in vregs
    skp = jnp.zeros((T_PAD, DL), f32)

    for i in range(N_LAYERS):              # static unroll, 6 layers
        wli = wl_ref[i]                    # (WL_ROWS, WL_COLS)
        sd = smat_ref[S_IDX[i]]            # (T_PAD, T_PAD) shift-by-dilation matrix
        # Both dilation taps from ONE MXU issue: v = [x@W0 | x@W1].
        v = jnp.dot(x, wli[0:RL, :], preferred_element_type=f32)          # (T_PAD, 2*PL)
        # Dilated tap: shift tap-0 contribution down by `dil` rows (zero fill),
        # expressed as a tiny MXU matmul -- residual never round-trips VMEM and
        # there are no misaligned sublane loads.
        pre = (jnp.dot(sd, v[:, :PL], preferred_element_type=f32)
               + v[:, PL:] + pro[:, PL * i:PL * (i + 1)])
        # Single tanh per layer: gate cols were pre-scaled by 0.5 host-side, so
        # z' = tanh(f)*(1+tanh(g/2)) = 2*tanh(f)*sigmoid(g); the remaining 0.5
        # is folded into Wz.  EUP-only nonlinearity.
        t = jnp.tanh(pre)
        z = t[:, :DL] * (1.0 + t[:, DL:])
        # Fused residual||skip projection.
        zo = jnp.dot(z, wli[RL:WL_ROWS, 0:PL], preferred_element_type=f32)
        x = zo[:, :RL] + x
        skp = skp + zo[:, RL:]

    # Post stack on the whole slab (garbage rows are never read back out).
    wpost = wl_ref[N_LAYERS]
    h = jnp.maximum(skp, 0.0)
    h = (jnp.dot(h, wpost[0:SL, 0:HL], preferred_element_type=f32)
         + wpost[POST_BIAS_ROW:POST_BIAS_ROW + 1, 0:HL])
    h = jnp.maximum(h, 0.0)
    q = (jnp.dot(h, wpost[0:HL, PL:PL + QL], preferred_element_type=f32)
         + wpost[POST_BIAS_ROW:POST_BIAS_ROW + 1, PL:PL + QL])
    out_ref[...] = q                       # (T_PAD, QL) lane-dense slab


def wavenet_stack_pallas(wav_tc, cond_tc, kp):
    """wav_tc: (B, T_COND, Q), cond_tc: (B, T_COND, N_COND) -> (B, T_OUT, Q)."""
    f32 = jnp.float32
    assert wav_tc.shape[0] == B
    # Right-aligned, 8-row-aligned time slab; batch folded along LANES so every
    # op sees 2x the lanes and the dilation shift cannot leak across batch
    # elements.  Single grid step on a single TensorCore: per-core work is far
    # too small for a megacore split to pay for its duplicated weight/cond DMAs
    # (v7x note from the review).
    wav_p = jnp.pad(wav_tc, ((0, 0), (N_PAD_TOP, 0), (0, 0)))
    cond_p = jnp.pad(cond_tc, ((0, 0), (N_PAD_TOP, 0), (0, 0)))
    per_b = jnp.concatenate([wav_p, cond_p], axis=-1)          # (B, T_PAD, IN_B)
    cols = [per_b[b] for b in range(B)] + [jnp.ones((T_PAD, 1), f32)]
    x_in = jnp.concatenate(cols, axis=-1)                      # (T_PAD, KIN)
    x_in = jnp.pad(x_in, ((0, 0), (0, KIN_PAD - KIN)))         # (T_PAD, KIN_PAD)

    slab = pl.pallas_call(
        _wavenet_stack_kernel,
        out_shape=jax.ShapeDtypeStruct((T_PAD, QL), f32),
        grid=(1,),
        in_specs=[
            pl.BlockSpec((T_PAD, KIN_PAD), lambda i: (0, 0)),
            pl.BlockSpec((KIN_PAD, NPRO), lambda i: (0, 0)),
            pl.BlockSpec((N_LAYERS + 1, WL_ROWS, WL_COLS), lambda i: (0, 0, 0)),
            pl.BlockSpec((len(UNIQ_DILS), T_PAD, T_PAD), lambda i: (0, 0, 0)),
        ],
        out_specs=pl.BlockSpec((T_PAD, QL), lambda i: (0, 0)),
        compiler_params=pltpu.CompilerParams(dimension_semantics=("arbitrary",)),
    )(x_in, kp['wpro'], kp['wl'], kp['smat'])

    out = jnp.stack(
        [slab[T_PAD - T_OUT:, b * N_QUANT:(b + 1) * N_QUANT] for b in range(B)])
    return out                                                 # (B, T_OUT, Q)


def wavenet_forward(p, kp, wav_onehot_tc, lc_sparse, speaker_inds, jitter_index):
    """wav_onehot_tc: (B, T1, Q) channel-last.  Returns (B, n_quant, T_OUT)."""
    cond_tc = preprocess_cond_tc(p, lc_sparse, speaker_inds, jitter_index)
    out = wavenet_stack_pallas(wav_onehot_tc, cond_tc, kp)     # (B, T_OUT, Q)
    return jnp.transpose(out, (0, 2, 1))                       # module layout


# -------------------------- pure-JAX reference -------------------------------
def wavenet_forward_ref(p, wav_onehot, lc_sparse, speaker_inds, jitter_index):
    cond = preprocess_cond_ncw(p, lc_sparse, speaker_inds, jitter_index)
    sig = conv1d(wav_onehot, p['base_w'], p['base_b'])
    skp_sum = jnp.zeros((wav_onehot.shape[0], N_SKP, T_OUT), jnp.float32)
    cond_lead = 0
    for i, dil in enumerate(DILATIONS):
        g = p['grcc'][i]
        cond_lead += dil
        skip_lead = TOTAL_DIL - cond_lead
        c = cond[:, :, cond_lead:]
        filt = conv1d(sig, g['sig_w'], g['sig_b'], dilation=dil) + conv1d(c, g['ps_w'])
        gate = conv1d(sig, g['gate_w'], g['gate_b'], dilation=dil) + conv1d(c, g['pg_w'])
        z = jnp.tanh(filt) * jax.nn.sigmoid(gate)
        new_sig = conv1d(z, g['dr_w']) + sig[:, :, dil:]
        skp = conv1d(z[:, :, skip_lead:], g['ds_w'])
        skp_sum = skp_sum + skp
        sig = new_sig
    post1 = conv1d(jax.nn.relu(skp_sum), p['p1_w'], p['p1_b'])
    quant = conv1d(jax.nn.relu(post1), p['p2_w'], p['p2_b'])
    return quant


# ----------------------------------- main ------------------------------------
if __name__ == "__main__":
    key = jax.random.PRNGKey(0)
    k_par, k_wav, k_lc, k_spk, k_jit = jax.random.split(key, 5)

    params = init_params(k_par)
    kparams = make_kernel_params(params)

    # wav one-hot over quantization levels, built channel-last (B, T1, Q).
    wav_idx = jax.random.randint(k_wav, (B, T_COND), 0, N_QUANT)
    wav_onehot_tc = jnp.eye(N_QUANT, dtype=jnp.float32)[wav_idx]     # (B, T1, Q)
    wav_onehot_ncw = jnp.transpose(wav_onehot_tc, (0, 2, 1))         # (B, Q, T1) for ref

    # lc_sparse: (B, n_lc_in, T2)
    lc_sparse = jax.random.normal(k_lc, (B, N_LC_IN, T_LC_SPARSE), jnp.float32)

    # speaker_inds: (B,) int
    speaker_inds = jax.random.randint(k_spk, (B,), 0, N_SPEAKERS)

    # jitter_index: flat indices into lc_sparse.flatten() (torch.take semantics),
    # implementing a +-1 time jitter within each batch element's first channel.
    shift = jax.random.randint(k_jit, (B, T_LC_SPARSE), -1, 2)
    jit_t = jnp.clip(jnp.arange(T_LC_SPARSE)[None, :] + shift, 0, T_LC_SPARSE - 1)
    jitter_index = (jnp.arange(B)[:, None] * (N_LC_IN * T_LC_SPARSE) + jit_t).astype(jnp.int32)

    out = jax.jit(wavenet_forward)(params, kparams, wav_onehot_tc, lc_sparse,
                                   speaker_inds, jitter_index)
    out = jax.block_until_ready(out)
    assert out.shape == (B, N_QUANT, T_OUT), out.shape

    ref = wavenet_forward_ref(params, wav_onehot_ncw, lc_sparse, speaker_inds, jitter_index)
    ref = jax.block_until_ready(ref)
    max_err = float(jnp.max(jnp.abs(out - ref)))
    # Error budget: in-kernel dots use MXU default precision (bf16 passes) while
    # the reference uses f32 Precision.HIGHEST.
    if max_err > 5e-2:
        raise AssertionError(f"Pallas kernel mismatch vs reference: max_err={max_err}")

    print("KERNEL_OK")
</pallas_src>

<mosaic_0001>
module attributes {stable_mosaic.version = 11 : i64} {
  func.func @_wavenet_stack_kernel(%arg0: i32, %arg1: memref<48x64xf32, #tpu.memory_space<vmem>>, %arg2: memref<64x208xf32, #tpu.memory_space<vmem>>, %arg3: memref<7x32x64xf32, #tpu.memory_space<vmem>>, %arg4: memref<3x48x48xf32, #tpu.memory_space<vmem>>, %arg5: memref<48x32xf32, #tpu.memory_space<vmem>>) attributes {dimension_semantics = [#tpu.dimension_semantics<arbitrary>], iteration_bounds = array<i64: 1>, scalar_prefetch = 0 : i64, scratch_operands = 0 : i64, tpu.core_type = #tpu.core_type<tc>, window_params = [{pipeline_mode = #tpu.pipeline_mode<synchronous>, transform_indices = @transform_0, window_bounds = array<i64: 48, 64>}, {pipeline_mode = #tpu.pipeline_mode<synchronous>, transform_indices = @transform_1, window_bounds = array<i64: 64, 208>}, {pipeline_mode = #tpu.pipeline_mode<synchronous>, transform_indices = @transform_2, window_bounds = array<i64: 7, 32, 64>}, {pipeline_mode = #tpu.pipeline_mode<synchronous>, transform_indices = @transform_3, window_bounds = array<i64: 3, 48, 48>}, {pipeline_mode = #tpu.pipeline_mode<synchronous>, transform_indices = @transform_4, window_bounds = array<i64: 48, 32>}]} {
    %c0 = arith.constant 0 : index
    %c0_0 = arith.constant 0 : index
    %0 = vector.load %arg1[%c0, %c0_0] : memref<48x64xf32, #tpu.memory_space<vmem>>, vector<48x64xf32>
    %c0_1 = arith.constant 0 : index
    %c0_2 = arith.constant 0 : index
    %1 = vector.load %arg2[%c0_1, %c0_2] : memref<64x208xf32, #tpu.memory_space<vmem>>, vector<64x208xf32>
    %cst = arith.constant dense<0.000000e+00> : vector<48x208xf32>
    %2 = tpu.matmul %0, %1, %cst {dimension_numbers = #tpu.dot_dimension_numbers<[1], [0], [0], [1], [0, 0, 1, 1], [], []>} : vector<48x64xf32>, vector<64x208xf32>, vector<48x208xf32> -> vector<48x208xf32>
    %3 = vector.extract_strided_slice %2 {offsets = [0, 192], sizes = [48, 16], strides = [1, 1]} : vector<48x208xf32> to vector<48x16xf32>
    %cst_3 = arith.constant 0.000000e+00 : f32
    %4 = vector.broadcast %cst_3 : f32 to vector<48x16xf32>
    %c0_4 = arith.constant 0 : index
    %c0_5 = arith.constant 0 : index
    %c0_6 = arith.constant 0 : index
    %5 = vector.load %arg3[%c0_4, %c0_5, %c0_6] : memref<7x32x64xf32, #tpu.memory_space<vmem>>, vector<1x32x64xf32>
    %6 = vector.shape_cast %5 : vector<1x32x64xf32> to vector<32x64xf32>
    %c0_7 = arith.constant 0 : index
    %c0_8 = arith.constant 0 : index
    %c0_9 = arith.constant 0 : index
    %7 = vector.load %arg4[%c0_7, %c0_8, %c0_9] : memref<3x48x48xf32, #tpu.memory_space<vmem>>, vector<1x48x48xf32>
    %8 = vector.shape_cast %7 : vector<1x48x48xf32> to vector<48x48xf32>
    %9 = vector.extract_strided_slice %6 {offsets = [0, 0], sizes = [16, 64], strides = [1, 1]} : vector<32x64xf32> to vector<16x64xf32>
    %cst_10 = arith.constant dense<0.000000e+00> : vector<48x64xf32>
    %10 = tpu.matmul %3, %9, %cst_10 {dimension_numbers = #tpu.dot_dimension_numbers<[1], [0], [0], [1], [0, 0, 1, 1], [], []>} : vector<48x16xf32>, vector<16x64xf32>, vector<48x64xf32> -> vector<48x64xf32>
    %11 = vector.extract_strided_slice %10 {offsets = [0, 0], sizes = [48, 32], strides = [1, 1]} : vector<48x64xf32> to vector<48x32xf32>
    %cst_11 = arith.constant dense<0.000000e+00> : vector<48x32xf32>
    %12 = tpu.matmul %8, %11, %cst_11 {dimension_numbers = #tpu.dot_dimension_numbers<[1], [0], [0], [1], [0, 0, 1, 1], [], []>} : vector<48x48xf32>, vector<48x32xf32>, vector<48x32xf32> -> vector<48x32xf32>
    %13 = vector.extract_strided_slice %10 {offsets = [0, 32], sizes = [48, 32], strides = [1, 1]} : vector<48x64xf32> to vector<48x32xf32>
    %14 = arith.addf %12, %13 : vector<48x32xf32>
    %15 = vector.extract_strided_slice %2 {offsets = [0, 0], sizes = [48, 32], strides = [1, 1]} : vector<48x208xf32> to vector<48x32xf32>
    %16 = arith.addf %14, %15 : vector<48x32xf32>
    %17 = math.tanh %16 : vector<48x32xf32>
    %18 = vector.extract_strided_slice %17 {offsets = [0, 0], sizes = [48, 16], strides = [1, 1]} : vector<48x32xf32> to vector<48x16xf32>
    %19 = vector.extract_strided_slice %17 {offsets = [0, 16], sizes = [48, 16], strides = [1, 1]} : vector<48x32xf32> to vector<48x16xf32>
    %cst_12 = arith.constant 1.000000e+00 : f32
    %20 = vector.broadcast %cst_12 : f32 to vector<48x16xf32>
    %21 = arith.addf %20, %19 : vector<48x16xf32>
    %22 = arith.mulf %18, %21 : vector<48x16xf32>
    %23 = vector.extract_strided_slice %6 {offsets = [16, 0], sizes = [16, 32], strides = [1, 1]} : vector<32x64xf32> to vector<16x32xf32>
    %cst_13 = arith.constant dense<0.000000e+00> : vector<48x32xf32>
    %24 = tpu.matmul %22, %23, %cst_13 {dimension_numbers = #tpu.dot_dimension_numbers<[1], [0], [0], [1], [0, 0, 1, 1], [], []>} : vector<48x16xf32>, vector<16x32xf32>, vector<48x32xf32> -> vector<48x32xf32>
    %25 = vector.extract_strided_slice %24 {offsets = [0, 0], sizes = [48, 16], strides = [1, 1]} : vector<48x32xf32> to vector<48x16xf32>
    %26 = arith.addf %25, %3 : vector<48x16xf32>
    %27 = vector.extract_strided_slice %24 {offsets = [0, 16], sizes = [48, 16], strides = [1, 1]} : vector<48x32xf32> to vector<48x16xf32>
    %28 = arith.addf %4, %27 : vector<48x16xf32>
    %c1 = arith.constant 1 : index
    %c0_14 = arith.constant 0 : index
    %c0_15 = arith.constant 0 : index
    %29 = vector.load %arg3[%c1, %c0_14, %c0_15] : memref<7x32x64xf32, #tpu.memory_space<vmem>>, vector<1x32x64xf32>
    %30 = vector.shape_cast %29 : vector<1x32x64xf32> to vector<32x64xf32>
    %c1_16 = arith.constant 1 : index
    %c0_17 = arith.constant 0 : index
    %c0_18 = arith.constant 0 : index
    %31 = vector.load %arg4[%c1_16, %c0_17, %c0_18] : memref<3x48x48xf32, #tpu.memory_space<vmem>>, vector<1x48x48xf32>
    %32 = vector.shape_cast %31 : vector<1x48x48xf32> to vector<48x48xf32>
    %33 = vector.extract_strided_slice %30 {offsets = [0, 0], sizes = [16, 64], strides = [1, 1]} : vector<32x64xf32> to vector<16x64xf32>
    %cst_19 = arith.constant dense<0.000000e+00> : vector<48x64xf32>
    %34 = tpu.matmul %26, %33, %cst_19 {dimension_numbers = #tpu.dot_dimension_numbers<[1], [0], [0], [1], [0, 0, 1, 1], [], []>} : vector<48x16xf32>, vector<16x64xf32>, vector<48x64xf32> -> vector<48x64xf32>
    %35 = vector.extract_strided_slice %34 {offsets = [0, 0], sizes = [48, 32], strides = [1, 1]} : vector<48x64xf32> to vector<48x32xf32>
    %cst_20 = arith.constant dense<0.000000e+00> : vector<48x32xf32>
    %36 = tpu.matmul %32, %35, %cst_20 {dimension_numbers = #tpu.dot_dimension_numbers<[1], [0], [0], [1], [0, 0, 1, 1], [], []>} : vector<48x48xf32>, vector<48x32xf32>, vector<48x32xf32> -> vector<48x32xf32>
    %37 = vector.extract_strided_slice %34 {offsets = [0, 32], sizes = [48, 32], strides = [1, 1]} : vector<48x64xf32> to vector<48x32xf32>
    %38 = arith.addf %36, %37 : vector<48x32xf32>
    %39 = vector.extract_strided_slice %2 {offsets = [0, 32], sizes = [48, 32], strides = [1, 1]} : vector<48x208xf32> to vector<48x32xf32>
    %40 = arith.addf %38, %39 : vector<48x32xf32>
    %41 = math.tanh %40 : vector<48x32xf32>
    %42 = vector.extract_strided_slice %41 {offsets = [0, 0], sizes = [48, 16], strides = [1, 1]} : vector<48x32xf32> to vector<48x16xf32>
    %43 = vector.extract_strided_slice %41 {offsets = [0, 16], sizes = [48, 16], strides = [1, 1]} : vector<48x32xf32> to vector<48x16xf32>
    %cst_21 = arith.constant 1.000000e+00 : f32
    %44 = vector.broadcast %cst_21 : f32 to vector<48x16xf32>
    %45 = arith.addf %44, %43 : vector<48x16xf32>
    %46 = arith.mulf %42, %45 : vector<48x16xf32>
    %47 = vector.extract_strided_slice %30 {offsets = [16, 0], sizes = [16, 32], strides = [1, 1]} : vector<32x64xf32> to vector<16x32xf32>
    %cst_22 = arith.constant dense<0.000000e+00> : vector<48x32xf32>
    %48 = tpu.matmul %46, %47, %cst_22 {dimension_numbers = #tpu.dot_dimension_numbers<[1], [0], [0], [1], [0, 0, 1, 1], [], []>} : vector<48x16xf32>, vector<16x32xf32>, vector<48x32xf32> -> vector<48x32xf32>
    %49 = vector.extract_strided_slice %48 {offsets = [0, 0], sizes = [48, 16], strides = [1, 1]} : vector<48x32xf32> to vector<48x16xf32>
    %50 = arith.addf %49, %26 : vector<48x16xf32>
    %51 = vector.extract_strided_slice %48 {offsets = [0, 16], sizes = [48, 16], strides = [1, 1]} : vector<48x32xf32> to vector<48x16xf32>
    %52 = arith.addf %28, %51 : vector<48x16xf32>
    %c2 = arith.constant 2 : index
    %c0_23 = arith.constant 0 : index
    %c0_24 = arith.constant 0 : index
    %53 = vector.load %arg3[%c2, %c0_23, %c0_24] : memref<7x32x64xf32, #tpu.memory_space<vmem>>, vector<1x32x64xf32>
    %54 = vector.shape_cast %53 : vector<1x32x64xf32> to vector<32x64xf32>
    %c2_25 = arith.constant 2 : index
    %c0_26 = arith.constant 0 : index
    %c0_27 = arith.constant 0 : index
    %55 = vector.load %arg4[%c2_25, %c0_26, %c0_27] : memref<3x48x48xf32, #tpu.memory_space<vmem>>, vector<1x48x48xf32>
    %56 = vector.shape_cast %55 : vector<1x48x48xf32> to vector<48x48xf32>
    %57 = vector.extract_strided_slice %54 {offsets = [0, 0], sizes = [16, 64], strides = [1, 1]} : vector<32x64xf32> to vector<16x64xf32>
    %cst_28 = arith.constant dense<0.000000e+00> : vector<48x64xf32>
    %58 = tpu.matmul %50, %57, %cst_28 {dimension_numbers = #tpu.dot_dimension_numbers<[1], [0], [0], [1], [0, 0, 1, 1], [], []>} : vector<48x16xf32>, vector<16x64xf32>, vector<48x64xf32> -> vector<48x64xf32>
    %59 = vector.extract_strided_slice %58 {offsets = [0, 0], sizes = [48, 32], strides = [1, 1]} : vector<48x64xf32> to vector<48x32xf32>
    %cst_29 = arith.constant dense<0.000000e+00> : vector<48x32xf32>
    %60 = tpu.matmul %56, %59, %cst_29 {dimension_numbers = #tpu.dot_dimension_numbers<[1], [0], [0], [1], [0, 0, 1, 1], [], []>} : vector<48x48xf32>, vector<48x32xf32>, vector<48x32xf32> -> vector<48x32xf32>
    %61 = vector.extract_strided_slice %58 {offsets = [0, 32], sizes = [48, 32], strides = [1, 1]} : vector<48x64xf32> to vector<48x32xf32>
    %62 = arith.addf %60, %61 : vector<48x32xf32>
    %63 = vector.extract_strided_slice %2 {offsets = [0, 64], sizes = [48, 32], strides = [1, 1]} : vector<48x208xf32> to vector<48x32xf32>
    %64 = arith.addf %62, %63 : vector<48x32xf32>
    %65 = math.tanh %64 : vector<48x32xf32>
    %66 = vector.extract_strided_slice %65 {offsets = [0, 0], sizes = [48, 16], strides = [1, 1]} : vector<48x32xf32> to vector<48x16xf32>
    %67 = vector.extract_strided_slice %65 {offsets = [0, 16], sizes = [48, 16], strides = [1, 1]} : vector<48x32xf32> to vector<48x16xf32>
    %cst_30 = arith.constant 1.000000e+00 : f32
    %68 = vector.broadcast %cst_30 : f32 to vector<48x16xf32>
    %69 = arith.addf %68, %67 : vector<48x16xf32>
    %70 = arith.mulf %66, %69 : vector<48x16xf32>
    %71 = vector.extract_strided_slice %54 {offsets = [16, 0], sizes = [16, 32], strides = [1, 1]} : vector<32x64xf32> to vector<16x32xf32>
    %cst_31 = arith.constant dense<0.000000e+00> : vector<48x32xf32>
    %72 = tpu.matmul %70, %71, %cst_31 {dimension_numbers = #tpu.dot_dimension_numbers<[1], [0], [0], [1], [0, 0, 1, 1], [], []>} : vector<48x16xf32>, vector<16x32xf32>, vector<48x32xf32> -> vector<48x32xf32>
    %73 = vector.extract_strided_slice %72 {offsets = [0, 0], sizes = [48, 16], strides = [1, 1]} : vector<48x32xf32> to vector<48x16xf32>
    %74 = arith.addf %73, %50 : vector<48x16xf32>
    %75 = vector.extract_strided_slice %72 {offsets = [0, 16], sizes = [48, 16], strides = [1, 1]} : vector<48x32xf32> to vector<48x16xf32>
    %76 = arith.addf %52, %75 : vector<48x16xf32>
    %c3 = arith.constant 3 : index
    %c0_32 = arith.constant 0 : index
    %c0_33 = arith.constant 0 : index
    %77 = vector.load %arg3[%c3, %c0_32, %c0_33] : memref<7x32x64xf32, #tpu.memory_space<vmem>>, vector<1x32x64xf32>
    %78 = vector.shape_cast %77 : vector<1x32x64xf32> to vector<32x64xf32>
    %c0_34 = arith.constant 0 : index
    %c0_35 = arith.constant 0 : index
    %c0_36 = arith.constant 0 : index
    %79 = vector.load %arg4[%c0_34, %c0_35, %c0_36] : memref<3x48x48xf32, #tpu.memory_space<vmem>>, vector<1x48x48xf32>
    %80 = vector.shape_cast %79 : vector<1x48x48xf32> to vector<48x48xf32>
    %81 = vector.extract_strided_slice %78 {offsets = [0, 0], sizes = [16, 64], strides = [1, 1]} : vector<32x64xf32> to vector<16x64xf32>
    %cst_37 = arith.constant dense<0.000000e+00> : vector<48x64xf32>
    %82 = tpu.matmul %74, %81, %cst_37 {dimension_numbers = #tpu.dot_dimension_numbers<[1], [0], [0], [1], [0, 0, 1, 1], [], []>} : vector<48x16xf32>, vector<16x64xf32>, vector<48x64xf32> -> vector<48x64xf32>
    %83 = vector.extract_strided_slice %82 {offsets = [0, 0], sizes = [48, 32], strides = [1, 1]} : vector<48x64xf32> to vector<48x32xf32>
    %cst_38 = arith.constant dense<0.000000e+00> : vector<48x32xf32>
    %84 = tpu.matmul %80, %83, %cst_38 {dimension_numbers = #tpu.dot_dimension_numbers<[1], [0], [0], [1], [0, 0, 1, 1], [], []>} : vector<48x48xf32>, vector<48x32xf32>, vector<48x32xf32> -> vector<48x32xf32>
    %85 = vector.extract_strided_slice %82 {offsets = [0, 32], sizes = [48, 32], strides = [1, 1]} : vector<48x64xf32> to vector<48x32xf32>
    %86 = arith.addf %84, %85 : vector<48x32xf32>
    %87 = vector.extract_strided_slice %2 {offsets = [0, 96], sizes = [48, 32], strides = [1, 1]} : vector<48x208xf32> to vector<48x32xf32>
    %88 = arith.addf %86, %87 : vector<48x32xf32>
    %89 = math.tanh %88 : vector<48x32xf32>
    %90 = vector.extract_strided_slice %89 {offsets = [0, 0], sizes = [48, 16], strides = [1, 1]} : vector<48x32xf32> to vector<48x16xf32>
    %91 = vector.extract_strided_slice %89 {offsets = [0, 16], sizes = [48, 16], strides = [1, 1]} : vector<48x32xf32> to vector<48x16xf32>
    %cst_39 = arith.constant 1.000000e+00 : f32
    %92 = vector.broadcast %cst_39 : f32 to vector<48x16xf32>
    %93 = arith.addf %92, %91 : vector<48x16xf32>
    %94 = arith.mulf %90, %93 : vector<48x16xf32>
    %95 = vector.extract_strided_slice %78 {offsets = [16, 0], sizes = [16, 32], strides = [1, 1]} : vector<32x64xf32> to vector<16x32xf32>
    %cst_40 = arith.constant dense<0.000000e+00> : vector<48x32xf32>
    %96 = tpu.matmul %94, %95, %cst_40 {dimension_numbers = #tpu.dot_dimension_numbers<[1], [0], [0], [1], [0, 0, 1, 1], [], []>} : vector<48x16xf32>, vector<16x32xf32>, vector<48x32xf32> -> vector<48x32xf32>
    %97 = vector.extract_strided_slice %96 {offsets = [0, 0], sizes = [48, 16], strides = [1, 1]} : vector<48x32xf32> to vector<48x16xf32>
    %98 = arith.addf %97, %74 : vector<48x16xf32>
    %99 = vector.extract_strided_slice %96 {offsets = [0, 16], sizes = [48, 16], strides = [1, 1]} : vector<48x32xf32> to vector<48x16xf32>
    %100 = arith.addf %76, %99 : vector<48x16xf32>
    %c4 = arith.constant 4 : index
    %c0_41 = arith.constant 0 : index
    %c0_42 = arith.constant 0 : index
    %101 = vector.load %arg3[%c4, %c0_41, %c0_42] : memref<7x32x64xf32, #tpu.memory_space<vmem>>, vector<1x32x64xf32>
    %102 = vector.shape_cast %101 : vector<1x32x64xf32> to vector<32x64xf32>
    %c1_43 = arith.constant 1 : index
    %c0_44 = arith.constant 0 : index
    %c0_45 = arith.constant 0 : index
    %103 = vector.load %arg4[%c1_43, %c0_44, %c0_45] : memref<3x48x48xf32, #tpu.memory_space<vmem>>, vector<1x48x48xf32>
    %104 = vector.shape_cast %103 : vector<1x48x48xf32> to vector<48x48xf32>
    %105 = vector.extract_strided_slice %102 {offsets = [0, 0], sizes = [16, 64], strides = [1, 1]} : vector<32x64xf32> to vector<16x64xf32>
    %cst_46 = arith.constant dense<0.000000e+00> : vector<48x64xf32>
    %106 = tpu.matmul %98, %105, %cst_46 {dimension_numbers = #tpu.dot_dimension_numbers<[1], [0], [0], [1], [0, 0, 1, 1], [], []>} : vector<48x16xf32>, vector<16x64xf32>, vector<48x64xf32> -> vector<48x64xf32>
    %107 = vector.extract_strided_slice %106 {offsets = [0, 0], sizes = [48, 32], strides = [1, 1]} : vector<48x64xf32> to vector<48x32xf32>
    %cst_47 = arith.constant dense<0.000000e+00> : vector<48x32xf32>
    %108 = tpu.matmul %104, %107, %cst_47 {dimension_numbers = #tpu.dot_dimension_numbers<[1], [0], [0], [1], [0, 0, 1, 1], [], []>} : vector<48x48xf32>, vector<48x32xf32>, vector<48x32xf32> -> vector<48x32xf32>
    %109 = vector.extract_strided_slice %106 {offsets = [0, 32], sizes = [48, 32], strides = [1, 1]} : vector<48x64xf32> to vector<48x32xf32>
    %110 = arith.addf %108, %109 : vector<48x32xf32>
    %111 = vector.extract_strided_slice %2 {offsets = [0, 128], sizes = [48, 32], strides = [1, 1]} : vector<48x208xf32> to vector<48x32xf32>
    %112 = arith.addf %110, %111 : vector<48x32xf32>
    %113 = math.tanh %112 : vector<48x32xf32>
    %114 = vector.extract_strided_slice %113 {offsets = [0, 0], sizes = [48, 16], strides = [1, 1]} : vector<48x32xf32> to vector<48x16xf32>
    %115 = vector.extract_strided_slice %113 {offsets = [0, 16], sizes = [48, 16], strides = [1, 1]} : vector<48x32xf32> to vector<48x16xf32>
    %cst_48 = arith.constant 1.000000e+00 : f32
    %116 = vector.broadcast %cst_48 : f32 to vector<48x16xf32>
    %117 = arith.addf %116, %115 : vector<48x16xf32>
    %118 = arith.mulf %114, %117 : vector<48x16xf32>
    %119 = vector.extract_strided_slice %102 {offsets = [16, 0], sizes = [16, 32], strides = [1, 1]} : vector<32x64xf32> to vector<16x32xf32>
    %cst_49 = arith.constant dense<0.000000e+00> : vector<48x32xf32>
    %120 = tpu.matmul %118, %119, %cst_49 {dimension_numbers = #tpu.dot_dimension_numbers<[1], [0], [0], [1], [0, 0, 1, 1], [], []>} : vector<48x16xf32>, vector<16x32xf32>, vector<48x32xf32> -> vector<48x32xf32>
    %121 = vector.extract_strided_slice %120 {offsets = [0, 0], sizes = [48, 16], strides = [1, 1]} : vector<48x32xf32> to vector<48x16xf32>
    %122 = arith.addf %121, %98 : vector<48x16xf32>
    %123 = vector.extract_strided_slice %120 {offsets = [0, 16], sizes = [48, 16], strides = [1, 1]} : vector<48x32xf32> to vector<48x16xf32>
    %124 = arith.addf %100, %123 : vector<48x16xf32>
    %c5 = arith.constant 5 : index
    %c0_50 = arith.constant 0 : index
    %c0_51 = arith.constant 0 : index
    %125 = vector.load %arg3[%c5, %c0_50, %c0_51] : memref<7x32x64xf32, #tpu.memory_space<vmem>>, vector<1x32x64xf32>
    %126 = vector.shape_cast %125 : vector<1x32x64xf32> to vector<32x64xf32>
    %c2_52 = arith.constant 2 : index
    %c0_53 = arith.constant 0 : index
    %c0_54 = arith.constant 0 : index
    %127 = vector.load %arg4[%c2_52, %c0_53, %c0_54] : memref<3x48x48xf32, #tpu.memory_space<vmem>>, vector<1x48x48xf32>
    %128 = vector.shape_cast %127 : vector<1x48x48xf32> to vector<48x48xf32>
    %129 = vector.extract_strided_slice %126 {offsets = [0, 0], sizes = [16, 64], strides = [1, 1]} : vector<32x64xf32> to vector<16x64xf32>
    %cst_55 = arith.constant dense<0.000000e+00> : vector<48x64xf32>
    %130 = tpu.matmul %122, %129, %cst_55 {dimension_numbers = #tpu.dot_dimension_numbers<[1], [0], [0], [1], [0, 0, 1, 1], [], []>} : vector<48x16xf32>, vector<16x64xf32>, vector<48x64xf32> -> vector<48x64xf32>
    %131 = vector.extract_strided_slice %130 {offsets = [0, 0], sizes = [48, 32], strides = [1, 1]} : vector<48x64xf32> to vector<48x32xf32>
    %cst_56 = arith.constant dense<0.000000e+00> : vector<48x32xf32>
    %132 = tpu.matmul %128, %131, %cst_56 {dimension_numbers = #tpu.dot_dimension_numbers<[1], [0], [0], [1], [0, 0, 1, 1], [], []>} : vector<48x48xf32>, vector<48x32xf32>, vector<48x32xf32> -> vector<48x32xf32>
    %133 = vector.extract_strided_slice %130 {offsets = [0, 32], sizes = [48, 32], strides = [1, 1]} : vector<48x64xf32> to vector<48x32xf32>
    %134 = arith.addf %132, %133 : vector<48x32xf32>
    %135 = vector.extract_strided_slice %2 {offsets = [0, 160], sizes = [48, 32], strides = [1, 1]} : vector<48x208xf32> to vector<48x32xf32>
    %136 = arith.addf %134, %135 : vector<48x32xf32>
    %137 = math.tanh %136 : vector<48x32xf32>
    %138 = vector.extract_strided_slice %137 {offsets = [0, 0], sizes = [48, 16], strides = [1, 1]} : vector<48x32xf32> to vector<48x16xf32>
    %139 = vector.extract_strided_slice %137 {offsets = [0, 16], sizes = [48, 16], strides = [1, 1]} : vector<48x32xf32> to vector<48x16xf32>
    %cst_57 = arith.constant 1.000000e+00 : f32
    %140 = vector.broadcast %cst_57 : f32 to vector<48x16xf32>
    %141 = arith.addf %140, %139 : vector<48x16xf32>
    %142 = arith.mulf %138, %141 : vector<48x16xf32>
    %143 = vector.extract_strided_slice %126 {offsets = [16, 0], sizes = [16, 32], strides = [1, 1]} : vector<32x64xf32> to vector<16x32xf32>
    %cst_58 = arith.constant dense<0.000000e+00> : vector<48x32xf32>
    %144 = tpu.matmul %142, %143, %cst_58 {dimension_numbers = #tpu.dot_dimension_numbers<[1], [0], [0], [1], [0, 0, 1, 1], [], []>} : vector<48x16xf32>, vector<16x32xf32>, vector<48x32xf32> -> vector<48x32xf32>
    %145 = vector.extract_strided_slice %144 {offsets = [0, 16], sizes = [48, 16], strides = [1, 1]} : vector<48x32xf32> to vector<48x16xf32>
    %146 = arith.addf %124, %145 : vector<48x16xf32>
    %c6 = arith.constant 6 : index
    %c0_59 = arith.constant 0 : index
    %c0_60 = arith.constant 0 : index
    %147 = vector.load %arg3[%c6, %c0_59, %c0_60] : memref<7x32x64xf32, #tpu.memory_space<vmem>>, vector<1x32x64xf32>
    %148 = vector.shape_cast %147 : vector<1x32x64xf32> to vector<32x64xf32>
    %cst_61 = arith.constant 0.000000e+00 : f32
    %149 = vector.broadcast %cst_61 : f32 to vector<48x16xf32>
    %150 = arith.maximumf %146, %149 : vector<48x16xf32>
    %151 = vector.extract_strided_slice %148 {offsets = [0, 0], sizes = [16, 16], strides = [1, 1]} : vector<32x64xf32> to vector<16x16xf32>
    %cst_62 = arith.constant dense<0.000000e+00> : vector<48x16xf32>
    %152 = tpu.matmul %150, %151, %cst_62 {dimension_numbers = #tpu.dot_dimension_numbers<[1], [0], [0], [1], [0, 0, 1, 1], [], []>} : vector<48x16xf32>, vector<16x16xf32>, vector<48x16xf32> -> vector<48x16xf32>
    %153 = vector.extract_strided_slice %148 {offsets = [16, 0], sizes = [1, 16], strides = [1, 1]} : vector<32x64xf32> to vector<1x16xf32>
    %154 = vector.broadcast %153 : vector<1x16xf32> to vector<48x16xf32>
    %155 = arith.addf %152, %154 : vector<48x16xf32>
    %cst_63 = arith.constant 0.000000e+00 : f32
    %156 = vector.broadcast %cst_63 : f32 to vector<48x16xf32>
    %157 = arith.maximumf %155, %156 : vector<48x16xf32>
    %158 = vector.extract_strided_slice %148 {offsets = [0, 32], sizes = [16, 32], strides = [1, 1]} : vector<32x64xf32> to vector<16x32xf32>
    %cst_64 = arith.constant dense<0.000000e+00> : vector<48x32xf32>
    %159 = tpu.matmul %157, %158, %cst_64 {dimension_numbers = #tpu.dot_dimension_numbers<[1], [0], [0], [1], [0, 0, 1, 1], [], []>} : vector<48x16xf32>, vector<16x32xf32>, vector<48x32xf32> -> vector<48x32xf32>
    %160 = vector.extract_strided_slice %148 {offsets = [16, 32], sizes = [1, 32], strides = [1, 1]} : vector<32x64xf32> to vector<1x32xf32>
    %161 = vector.broadcast %160 : vector<1x32xf32> to vector<48x32xf32>
    %162 = arith.addf %159, %161 : vector<48x32xf32>
    %c0_65 = arith.constant 0 : index
    %c0_66 = arith.constant 0 : index
    %163 = vector.load %arg5[%c0_65, %c0_66] : memref<48x32xf32, #tpu.memory_space<vmem>>, vector<48x32xf32>
    tpu.vector_store %arg5[%c0_65, %c0_66], %162 {strides = array<i32>} : memref<48x32xf32, #tpu.memory_space<vmem>>, vector<48x32xf32>,
    return
  }
  func.func @transform_0(%arg0: i32) -> (i32, i32) {
    %c0_i32 = arith.constant 0 : i32
    %c0_i32_0 = arith.constant 0 : i32
    %c0_i32_1 = arith.constant 0 : i32
    return %c0_i32, %c0_i32_0 : i32, i32
  }
  func.func @transform_1(%arg0: i32) -> (i32, i32) {
    %c0_i32 = arith.constant 0 : i32
    %c0_i32_0 = arith.constant 0 : i32
    %c0_i32_1 = arith.constant 0 : i32
    return %c0_i32, %c0_i32_0 : i32, i32
  }
  func.func @transform_2(%arg0: i32) -> (i32, i32, i32) {
    %c0_i32 = arith.constant 0 : i32
    %c0_i32_0 = arith.constant 0 : i32
    %c0_i32_1 = arith.constant 0 : i32
    %c0_i32_2 = arith.constant 0 : i32
    return %c0_i32, %c0_i32_0, %c0_i32_1 : i32, i32, i32
  }
  func.func @transform_3(%arg0: i32) -> (i32, i32, i32) {
    %c0_i32 = arith.constant 0 : i32
    %c0_i32_0 = arith.constant 0 : i32
    %c0_i32_1 = arith.constant 0 : i32
    %c0_i32_2 = arith.constant 0 : i32
    return %c0_i32, %c0_i32_0, %c0_i32_1 : i32, i32, i32
  }
  func.func @transform_4(%arg0: i32) -> (i32, i32) {
    %c0_i32 = arith.constant 0 : i32
    %c0_i32_0 = arith.constant 0 : i32
    %c0_i32_1 = arith.constant 0 : i32
    return %c0_i32, %c0_i32_0 : i32, i32
  }
}

</mosaic_0001>

<llo_original>
// kernel: wavenet_forward.1
$region0: #{wavenet_forward.1}
  #allocation0 [shape = 'u32[]', space=smem, size = 0x4, offset = 0x4, fixed_abs, tag = 'smem constant byte address 0x4 - core index']
  #allocation1 [shape = 'u32[72,128]{1,0:T(1,128)}', space=vmem, size = 0x9000, scoped, tag = 'internal scratch']
  %s0 = inlined_call_operand.vmem [shape: f32[48,64], index: 0, kind: input, shape index: {}]
  %s1 = inlined_call_operand.vmem [shape: f32[64,208], index: 1, kind: input, shape index: {}]
  %s2 = inlined_call_operand.vmem [shape: f32[7,32,64], index: 2, kind: input, shape index: {}]
  %s3 = inlined_call_operand.vmem [shape: f32[3,48,48], index: 3, kind: input, shape index: {}]
  %s4 = inlined_call_operand.vmem [shape: f32[48,32], index: 4, kind: output, shape index: {}]
  %s5 = sld [smem:[#allocation0]]
  $region26: #{wavenet_forward.1} parent=0
    _
  %s7 = ssub.s32 1, %s5
  %s8 = scalar_select 0, %s7, %s5
  // Predicated region
  $region2: #{wavenet_forward.1} parent=0 // pred_check
    _
  $region3: #{wavenet_forward.1} parent=0 // pred_check_branch
    %10 = sbr.rel (0) target = $region5
  $region4: #{wavenet_forward.1} parent=0 // pred_region
    _
  $region5: #{wavenet_forward.1} parent=0 // pred_fallthru
    _
  // Predicated region
  $region6: #{wavenet_forward.1} parent=0 // pred_check
    _
  $region7: #{wavenet_forward.1} parent=0 // pred_check_branch
    %12 = sbr.rel (0) target = $region9
  $region8: #{wavenet_forward.1} parent=0 // pred_region
    _
  $region9: #{wavenet_forward.1} parent=0 // pred_fallthru
    _
  // Predicated region
  $region10: #{wavenet_forward.1} parent=0 // pred_check
    _
  $region11: #{wavenet_forward.1} parent=0 // pred_check_branch
    %14 = sbr.rel (0) target = $region13
  $region12: #{wavenet_forward.1} parent=0 // pred_region
    _
  $region13: #{wavenet_forward.1} parent=0 // pred_fallthru
    _
  // Predicated region
  $region14: #{wavenet_forward.1} parent=0 // pred_check
    _
  $region15: #{wavenet_forward.1} parent=0 // pred_check_branch
    %16 = sbr.rel (0) target = $region17
  $region16: #{wavenet_forward.1} parent=0 // pred_region
    _
  $region17: #{wavenet_forward.1} parent=0 // pred_fallthru
    _
  %v17 = vld [vmem:[%s0] sm:$0xff]
  %v18 = vld [vmem:[%s0 + $0x8] sm:$0xff]
  %v19 = vld [vmem:[%s0 + $0x10] sm:$0xff]
  %v20 = vld [vmem:[%s0 + $0x18] sm:$0xff]
  %v21 = vld [vmem:[%s0 + $0x20] sm:$0xff]
  %v22 = vld [vmem:[%s0 + $0x28] sm:$0xff]
  %v23 = vld [vmem:[%s1] sm:$0xff]
  %v24 = vld [vmem:[%s1 + $0x8] sm:$0xff]
  %v25 = vld [vmem:[%s1 + $0x10] sm:$0xff]
  %v26 = vld [vmem:[%s1 + $0x18] sm:$0xff]
  %v27 = vld [vmem:[%s1 + $0x20] sm:$0xff]
  %v28 = vld [vmem:[%s1 + $0x28] sm:$0xff]
  %v29 = vld [vmem:[%s1 + $0x30] sm:$0xff]
  %v30 = vld [vmem:[%s1 + $0x38] sm:$0xff]
  %v31 = vld [vmem:[%s1 + $0x40] sm:$0xff]
  %v32 = vld [vmem:[%s1 + $0x48] sm:$0xff]
  %v33 = vld [vmem:[%s1 + $0x50] sm:$0xff]
  %v34 = vld [vmem:[%s1 + $0x58] sm:$0xff]
  %v35 = vld [vmem:[%s1 + $0x60] sm:$0xff]
  %v36 = vld [vmem:[%s1 + $0x68] sm:$0xff]
  %v37 = vld [vmem:[%s1 + $0x70] sm:$0xff]
  %v38 = vld [vmem:[%s1 + $0x78] sm:$0xff]
  %vm39 = vcmask 523264
  %v41 = vsel %vm39, %v17, 0
  %v44 = vsel %vm39, %v18, 0
  %v47 = vsel %vm39, %v19, 0
  %v50 = vsel %vm39, %v20, 0
  %v53 = vsel %vm39, %v21, 0
  %v56 = vsel %vm39, %v22, 0
  %58 = vmatpush.msra.mxu0 0.0
  %59 = vmatpush.msra.mxu0 0.0
  %60 = vmatpush.msra.mxu0 0.0
  %61 = vmatpush.msra.mxu0 0.0
  %62 = vmatpush.msra.mxu0 0.0
  %63 = vmatpush.msra.mxu0 0.0
  %64 = vmatpush.msra.mxu0 0.0
  %65 = vmatpush.msra.mxu0 0.0
  %66 = vmatpush.msra.mxu0 %v37
  %67 = vmatpush.msra.mxu0 %v35
  %68 = vmatpush.msra.mxu0 %v33
  %69 = vmatpush.msra.mxu0 %v31
  %70 = vmatpush.msra.mxu0 %v29
  %71 = vmatpush.msra.mxu0 %v27
  %72 = vmatpush.msra.mxu0 %v25
  %73 = vmatpush.msra.mxu0 %v23
  %74 = vmatmul.f32.gmra.mxu0 %v41
  %v75 = vpop.f32.mrf.mxu0
  %v76 = vadd.f32 0.0, %v75
  %77 = vmatmul.f32.gmra.mxu0 %v44
  %v78 = vpop.f32.mrf.mxu0
  %v79 = vadd.f32 0.0, %v78
  %80 = vmatmul.f32.gmra.mxu0 %v47
  %v81 = vpop.f32.mrf.mxu0
  %v82 = vadd.f32 0.0, %v81
  %83 = vmatmul.f32.gmra.mxu0 %v50
  %v84 = vpop.f32.mrf.mxu0
  %v85 = vadd.f32 0.0, %v84
  %86 = vmatmul.f32.gmra.mxu0 %v53
  %v87 = vpop.f32.mrf.mxu0
  %v88 = vadd.f32 0.0, %v87
  %89 = vmatmul.f32.gmra.mxu0 %v56
  %v90 = vpop.f32.mrf.mxu0
  %v91 = vadd.f32 0.0, %v90
  %92 = vdwg.mxu0
  %93 = vmatpush.msra.mxu0 0.0
  %94 = vmatpush.msra.mxu0 0.0
  %95 = vmatpush.msra.mxu0 0.0
  %96 = vmatpush.msra.mxu0 0.0
  %97 = vmatpush.msra.mxu0 0.0
  %98 = vmatpush.msra.mxu0 0.0
  %99 = vmatpush.msra.mxu0 0.0
  %100 = vmatpush.msra.mxu0 0.0
  %101 = vmatpush.msra.mxu0 %v38
  %102 = vmatpush.msra.mxu0 %v36
  %103 = vmatpush.msra.mxu0 %v34
  %104 = vmatpush.msra.mxu0 %v32
  %105 = vmatpush.msra.mxu0 %v30
  %106 = vmatpush.msra.mxu0 %v28
  %107 = vmatpush.msra.mxu0 %v26
  %108 = vmatpush.msra.mxu0 %v24
  %109 = vmatmul.f32.gmra.mxu0 %v41
  %v110 = vpop.f32.mrf.mxu0
  %v111 = vadd.f32 0.0, %v110
  %112 = vmatmul.f32.gmra.mxu0 %v44
  %v113 = vpop.f32.mrf.mxu0
  %v114 = vadd.f32 0.0, %v113
  %115 = vmatmul.f32.gmra.mxu0 %v47
  %v116 = vpop.f32.mrf.mxu0
  %v117 = vadd.f32 0.0, %v116
  %118 = vmatmul.f32.gmra.mxu0 %v50
  %v119 = vpop.f32.mrf.mxu0
  %v120 = vadd.f32 0.0, %v119
  %121 = vmatmul.f32.gmra.mxu0 %v53
  %v122 = vpop.f32.mrf.mxu0
  %v123 = vadd.f32 0.0, %v122
  %124 = vmatmul.f32.gmra.mxu0 %v56
  %v125 = vpop.f32.mrf.mxu0
  %v126 = vadd.f32 0.0, %v125
  %127 = vdwg.mxu0
  %v128 = vld [vmem:[%s2] sm:$0xff]
  %v129 = vld [vmem:[%s2 + $0x8] sm:$0xff]
  %v130 = vld [vmem:[%s2 + $0x10] sm:$0xff]
  %v131 = vld [vmem:[%s2 + $0x18] sm:$0xff]
  %v132 = vld [vmem:[%s3] sm:$0xff]
  %v133 = vld [vmem:[%s3 + $0x8] sm:$0xff]
  %v134 = vld [vmem:[%s3 + $0x10] sm:$0xff]
  %v135 = vld [vmem:[%s3 + $0x18] sm:$0xff]
  %v136 = vld [vmem:[%s3 + $0x20] sm:$0xff]
  %v137 = vld [vmem:[%s3 + $0x28] sm:$0xff]
  %144 = vrot.lane.b32.xlu0 %v111, 64
  %v145 = vpop.permute.xlu0 %144
  %146 = vrot.lane.b32.xlu0 %v114, 64
  %v147 = vpop.permute.xlu0 %146
  %148 = vrot.lane.b32.xlu0 %v117, 64
  %v149 = vpop.permute.xlu0 %148
  %150 = vrot.lane.b32.xlu0 %v120, 64
  %v151 = vpop.permute.xlu0 %150
  %152 = vrot.lane.b32.xlu0 %v123, 64
  %v153 = vpop.permute.xlu0 %152
  %154 = vrot.lane.b32.xlu0 %v126, 64
  %v155 = vpop.permute.xlu0 %154
  %vm156 = vcmask 130048
  %v157 = vsel %vm156, %v145, 0
  %v159 = vsel %vm156, %v147, 0
  %v161 = vsel %vm156, %v149, 0
  %v163 = vsel %vm156, %v151, 0
  %v165 = vsel %vm156, %v153, 0
  %v167 = vsel %vm156, %v155, 0
  %169 = vmatpush.msra.mxu0 0.0
  %170 = vmatpush.msra.mxu0 0.0
  %171 = vmatpush.msra.mxu0 0.0
  %172 = vmatpush.msra.mxu0 0.0
  %173 = vmatpush.msra.mxu0 0.0
  %174 = vmatpush.msra.mxu0 0.0
  %175 = vmatpush.msra.mxu0 0.0
  %176 = vmatpush.msra.mxu0 0.0
  %177 = vmatpush.msra.mxu0 0.0
  %178 = vmatpush.msra.mxu0 0.0
  %179 = vmatpush.msra.mxu0 0.0
  %180 = vmatpush.msra.mxu0 0.0
  %181 = vmatpush.msra.mxu0 0.0
  %182 = vmatpush.msra.mxu0 0.0
  %183 = vmatpush.msra.mxu0 %v129
  %184 = vmatpush.msra.mxu0 %v128
  %185 = vmatmul.f32.gmra.mxu0 %v157
  %v186 = vpop.f32.mrf.mxu0
  %v187 = vadd.f32 0.0, %v186
  %188 = vmatmul.f32.gmra.mxu0 %v159
  %v189 = vpop.f32.mrf.mxu0
  %v190 = vadd.f32 0.0, %v189
  %191 = vmatmul.f32.gmra.mxu0 %v161
  %v192 = vpop.f32.mrf.mxu0
  %v193 = vadd.f32 0.0, %v192
  %194 = vmatmul.f32.gmra.mxu0 %v163
  %v195 = vpop.f32.mrf.mxu0
  %v196 = vadd.f32 0.0, %v195
  %197 = vmatmul.f32.gmra.mxu0 %v165
  %v198 = vpop.f32.mrf.mxu0
  %v199 = vadd.f32 0.0, %v198
  %200 = vmatmul.f32.gmra.mxu0 %v167
  %v201 = vpop.f32.mrf.mxu0
  %v202 = vadd.f32 0.0, %v201
  %203 = vdwg.mxu0
  %210 = vrot.lane.b32.xlu0 %v187, 96
  %v211 = vpop.permute.xlu0 %210
  %212 = vrot.lane.b32.xlu0 %v190, 96
  %v213 = vpop.permute.xlu0 %212
  %214 = vrot.lane.b32.xlu0 %v193, 96
  %v215 = vpop.permute.xlu0 %214
  %216 = vrot.lane.b32.xlu0 %v196, 96
  %v217 = vpop.permute.xlu0 %216
  %218 = vrot.lane.b32.xlu0 %v199, 96
  %v219 = vpop.permute.xlu0 %218
  %220 = vrot.lane.b32.xlu0 %v202, 96
  %v221 = vpop.permute.xlu0 %220
  %vm228 = vcmask 392192
  %v230 = vsel %vm228, %v132, 0
  %v233 = vsel %vm228, %v133, 0
  %v236 = vsel %vm228, %v134, 0
  %v239 = vsel %vm228, %v135, 0
  %v242 = vsel %vm228, %v136, 0
  %v245 = vsel %vm228, %v137, 0
  %247 = vmatpush.msra.mxu0 0.0
  %248 = vmatpush.msra.mxu0 0.0
  %249 = vmatpush.msra.mxu0 0.0
  %250 = vmatpush.msra.mxu0 0.0
  %251 = vmatpush.msra.mxu0 0.0
  %252 = vmatpush.msra.mxu0 0.0
  %253 = vmatpush.msra.mxu0 0.0
  %254 = vmatpush.msra.mxu0 0.0
  %255 = vmatpush.msra.mxu0 0.0
  %256 = vmatpush.msra.mxu0 0.0
  %257 = vmatpush.msra.mxu0 %v202
  %258 = vmatpush.msra.mxu0 %v199
  %259 = vmatpush.msra.mxu0 %v196
  %260 = vmatpush.msra.mxu0 %v193
  %261 = vmatpush.msra.mxu0 %v190
  %262 = vmatpush.msra.mxu0 %v187
  %263 = vmatmul.f32.gmra.mxu0 %v230
  %v264 = vpop.f32.mrf.mxu0
  %v265 = vadd.f32 %v211, %v264
  %266 = vmatmul.f32.gmra.mxu0 %v233
  %v267 = vpop.f32.mrf.mxu0
  %v268 = vadd.f32 %v213, %v267
  %269 = vmatmul.f32.gmra.mxu0 %v236
  %v270 = vpop.f32.mrf.mxu0
  %v271 = vadd.f32 %v215, %v270
  %272 = vmatmul.f32.gmra.mxu0 %v239
  %v273 = vpop.f32.mrf.mxu0
  %v274 = vadd.f32 %v217, %v273
  %275 = vmatmul.f32.gmra.mxu0 %v242
  %v276 = vpop.f32.mrf.mxu0
  %v277 = vadd.f32 %v219, %v276
  %278 = vmatmul.f32.gmra.mxu0 %v245
  %v279 = vpop.f32.mrf.mxu0
  %v280 = vadd.f32 %v221, %v279
  %281 = vdwg.mxu0
  %v282 = vadd.f32 %v265, %v76
  %v283 = vadd.f32 %v268, %v79
  %v284 = vadd.f32 %v271, %v82
  %v285 = vadd.f32 %v274, %v85
  %v286 = vadd.f32 %v277, %v88
  %v287 = vadd.f32 %v280, %v91
  %v288 = vtanh.pop %v282
  %v289 = vtanh.pop %v283
  %v290 = vtanh.pop %v284
  %v291 = vtanh.pop %v285
  %v292 = vtanh.pop %v286
  %v293 = vtanh.pop %v287
  %v294 = vadd.f32 %v288, 1.0
  %v295 = vadd.f32 %v289, 1.0
  %v296 = vadd.f32 %v290, 1.0
  %v297 = vadd.f32 %v291, 1.0
  %v298 = vadd.f32 %v292, 1.0
  %v299 = vadd.f32 %v293, 1.0
  %306 = vrot.lane.b32.xlu0 %v294, 112
  %v307 = vpop.permute.xlu0 %306
  %308 = vrot.lane.b32.xlu0 %v295, 112
  %v309 = vpop.permute.xlu0 %308
  %310 = vrot.lane.b32.xlu0 %v296, 112
  %v311 = vpop.permute.xlu0 %310
  %312 = vrot.lane.b32.xlu0 %v297, 112
  %v313 = vpop.permute.xlu0 %312
  %314 = vrot.lane.b32.xlu0 %v298, 112
  %v315 = vpop.permute.xlu0 %314
  %316 = vrot.lane.b32.xlu0 %v299, 112
  %v317 = vpop.permute.xlu0 %316
  %v324 = vmul.f32 %v288, %v307
  %v325 = vmul.f32 %v289, %v309
  %v326 = vmul.f32 %v290, %v311
  %v327 = vmul.f32 %v291, %v313
  %v328 = vmul.f32 %v292, %v315
  %v329 = vmul.f32 %v293, %v317
  %v331 = vsel %vm156, %v324, 0
  %v334 = vsel %vm156, %v325, 0
  %v337 = vsel %vm156, %v326, 0
  %v340 = vsel %vm156, %v327, 0
  %v343 = vsel %vm156, %v328, 0
  %v346 = vsel %vm156, %v329, 0
  %348 = vmatpush.msra.mxu0 0.0
  %349 = vmatpush.msra.mxu0 0.0
  %350 = vmatpush.msra.mxu0 0.0
  %351 = vmatpush.msra.mxu0 0.0
  %352 = vmatpush.msra.mxu0 0.0
  %353 = vmatpush.msra.mxu0 0.0
  %354 = vmatpush.msra.mxu0 0.0
  %355 = vmatpush.msra.mxu0 0.0
  %356 = vmatpush.msra.mxu0 0.0
  %357 = vmatpush.msra.mxu0 0.0
  %358 = vmatpush.msra.mxu0 0.0
  %359 = vmatpush.msra.mxu0 0.0
  %360 = vmatpush.msra.mxu0 0.0
  %361 = vmatpush.msra.mxu0 0.0
  %362 = vmatpush.msra.mxu0 %v131
  %363 = vmatpush.msra.mxu0 %v130
  %364 = vmatmul.f32.gmra.mxu0 %v331
  %v365 = vpop.f32.mrf.mxu0
  %v366 = vadd.f32 0.0, %v365
  %367 = vmatmul.f32.gmra.mxu0 %v334
  %v368 = vpop.f32.mrf.mxu0
  %v369 = vadd.f32 0.0, %v368
  %370 = vmatmul.f32.gmra.mxu0 %v337
  %v371 = vpop.f32.mrf.mxu0
  %v372 = vadd.f32 0.0, %v371
  %373 = vmatmul.f32.gmra.mxu0 %v340
  %v374 = vpop.f32.mrf.mxu0
  %v375 = vadd.f32 0.0, %v374
  %376 = vmatmul.f32.gmra.mxu0 %v343
  %v377 = vpop.f32.mrf.mxu0
  %v378 = vadd.f32 0.0, %v377
  %379 = vmatmul.f32.gmra.mxu0 %v346
  %v380 = vpop.f32.mrf.mxu0
  %v381 = vadd.f32 0.0, %v380
  %382 = vdwg.mxu0
  %v389 = vadd.f32 %v366, %v145
  %v390 = vadd.f32 %v369, %v147
  %v391 = vadd.f32 %v372, %v149
  %v392 = vadd.f32 %v375, %v151
  %v393 = vadd.f32 %v378, %v153
  %v394 = vadd.f32 %v381, %v155
  %v395 = vadd.f32 %v366, 0.0
  %v396 = vadd.f32 %v369, 0.0
  %v397 = vadd.f32 %v372, 0.0
  %v398 = vadd.f32 %v375, 0.0
  %v399 = vadd.f32 %v378, 0.0
  %v400 = vadd.f32 %v381, 0.0
  %s401 = scalar_lea.vmem %s2, 32
  %v402 = vld [vmem:[%s401] sm:$0xff]
  %v403 = vld [vmem:[%s401 + $0x8] sm:$0xff]
  %v404 = vld [vmem:[%s401 + $0x10] sm:$0xff]
  %v405 = vld [vmem:[%s401 + $0x18] sm:$0xff]
  %s406 = scalar_lea.vmem %s3, 48
  %v407 = vld [vmem:[%s406] sm:$0xff]
  %v408 = vld [vmem:[%s406 + $0x8] sm:$0xff]
  %v409 = vld [vmem:[%s406 + $0x10] sm:$0xff]
  %v410 = vld [vmem:[%s406 + $0x18] sm:$0xff]
  %v411 = vld [vmem:[%s406 + $0x20] sm:$0xff]
  %v412 = vld [vmem:[%s406 + $0x28] sm:$0xff]
  %v414 = vsel %vm156, %v389, 0
  %v417 = vsel %vm156, %v390, 0
  %v420 = vsel %vm156, %v391, 0
  %v423 = vsel %vm156, %v392, 0
  %v426 = vsel %vm156, %v393, 0
  %v429 = vsel %vm156, %v394, 0
  %431 = vmatpush.msra.mxu0 0.0
  %432 = vmatpush.msra.mxu0 0.0
  %433 = vmatpush.msra.mxu0 0.0
  %434 = vmatpush.msra.mxu0 0.0
  %435 = vmatpush.msra.mxu0 0.0
  %436 = vmatpush.msra.mxu0 0.0
  %437 = vmatpush.msra.mxu0 0.0
  %438 = vmatpush.msra.mxu0 0.0
  %439 = vmatpush.msra.mxu0 0.0
  %440 = vmatpush.msra.mxu0 0.0
  %441 = vmatpush.msra.mxu0 0.0
  %442 = vmatpush.msra.mxu0 0.0
  %443 = vmatpush.msra.mxu0 0.0
  %444 = vmatpush.msra.mxu0 0.0
  %445 = vmatpush.msra.mxu0 %v403
  %446 = vmatpush.msra.mxu0 %v402
  %447 = vmatmul.f32.gmra.mxu0 %v414
  %v448 = vpop.f32.mrf.mxu0
  %v449 = vadd.f32 0.0, %v448
  %450 = vmatmul.f32.gmra.mxu0 %v417
  %v451 = vpop.f32.mrf.mxu0
  %v452 = vadd.f32 0.0, %v451
  %453 = vmatmul.f32.gmra.mxu0 %v420
  %v454 = vpop.f32.mrf.mxu0
  %v455 = vadd.f32 0.0, %v454
  %456 = vmatmul.f32.gmra.mxu0 %v423
  %v457 = vpop.f32.mrf.mxu0
  %v458 = vadd.f32 0.0, %v457
  %459 = vmatmul.f32.gmra.mxu0 %v426
  %v460 = vpop.f32.mrf.mxu0
  %v461 = vadd.f32 0.0, %v460
  %462 = vmatmul.f32.gmra.mxu0 %v429
  %v463 = vpop.f32.mrf.mxu0
  %v464 = vadd.f32 0.0, %v463
  %465 = vdwg.mxu0
  %472 = vrot.lane.b32.xlu0 %v449, 96
  %v473 = vpop.permute.xlu0 %472
  %474 = vrot.lane.b32.xlu0 %v452, 96
  %v475 = vpop.permute.xlu0 %474
  %476 = vrot.lane.b32.xlu0 %v455, 96
  %v477 = vpop.permute.xlu0 %476
  %478 = vrot.lane.b32.xlu0 %v458, 96
  %v479 = vpop.permute.xlu0 %478
  %480 = vrot.lane.b32.xlu0 %v461, 96
  %v481 = vpop.permute.xlu0 %480
  %482 = vrot.lane.b32.xlu0 %v464, 96
  %v483 = vpop.permute.xlu0 %482
  %v491 = vsel %vm228, %v407, 0
  %v494 = vsel %vm228, %v408, 0
  %v497 = vsel %vm228, %v409, 0
  %v500 = vsel %vm228, %v410, 0
  %v503 = vsel %vm228, %v411, 0
  %v506 = vsel %vm228, %v412, 0
  %508 = vmatpush.msra.mxu0 0.0
  %509 = vmatpush.msra.mxu0 0.0
  %510 = vmatpush.msra.mxu0 0.0
  %511 = vmatpush.msra.mxu0 0.0
  %512 = vmatpush.msra.mxu0 0.0
  %513 = vmatpush.msra.mxu0 0.0
  %514 = vmatpush.msra.mxu0 0.0
  %515 = vmatpush.msra.mxu0 0.0
  %516 = vmatpush.msra.mxu0 0.0
  %517 = vmatpush.msra.mxu0 0.0
  %518 = vmatpush.msra.mxu0 %v464
  %519 = vmatpush.msra.mxu0 %v461
  %520 = vmatpush.msra.mxu0 %v458
  %521 = vmatpush.msra.mxu0 %v455
  %522 = vmatpush.msra.mxu0 %v452
  %523 = vmatpush.msra.mxu0 %v449
  %524 = vmatmul.f32.gmra.mxu0 %v491
  %v525 = vpop.f32.mrf.mxu0
  %v526 = vadd.f32 %v473, %v525
  %527 = vmatmul.f32.gmra.mxu0 %v494
  %v528 = vpop.f32.mrf.mxu0
  %v529 = vadd.f32 %v475, %v528
  %530 = vmatmul.f32.gmra.mxu0 %v497
  %v531 = vpop.f32.mrf.mxu0
  %v532 = vadd.f32 %v477, %v531
  %533 = vmatmul.f32.gmra.mxu0 %v500
  %v534 = vpop.f32.mrf.mxu0
  %v535 = vadd.f32 %v479, %v534
  %536 = vmatmul.f32.gmra.mxu0 %v503
  %v537 = vpop.f32.mrf.mxu0
  %v538 = vadd.f32 %v481, %v537
  %539 = vmatmul.f32.gmra.mxu0 %v506
  %v540 = vpop.f32.mrf.mxu0
  %v541 = vadd.f32 %v483, %v540
  %542 = vdwg.mxu0
  %549 = vrot.lane.b32.xlu0 %v76, 96
  %v550 = vpop.permute.xlu0 %549
  %551 = vrot.lane.b32.xlu0 %v79, 96
  %v552 = vpop.permute.xlu0 %551
  %553 = vrot.lane.b32.xlu0 %v82, 96
  %v554 = vpop.permute.xlu0 %553
  %555 = vrot.lane.b32.xlu0 %v85, 96
  %v556 = vpop.permute.xlu0 %555
  %557 = vrot.lane.b32.xlu0 %v88, 96
  %v558 = vpop.permute.xlu0 %557
  %559 = vrot.lane.b32.xlu0 %v91, 96
  %v560 = vpop.permute.xlu0 %559
  %v567 = vadd.f32 %v526, %v550
  %v568 = vadd.f32 %v529, %v552
  %v569 = vadd.f32 %v532, %v554
  %v570 = vadd.f32 %v535, %v556
  %v571 = vadd.f32 %v538, %v558
  %v572 = vadd.f32 %v541, %v560
  %v573 = vtanh.pop %v567
  %v574 = vtanh.pop %v568
  %v575 = vtanh.pop %v569
  %v576 = vtanh.pop %v570
  %v577 = vtanh.pop %v571
  %v578 = vtanh.pop %v572
  %v579 = vadd.f32 %v573, 1.0
  %v580 = vadd.f32 %v574, 1.0
  %v581 = vadd.f32 %v575, 1.0
  %v582 = vadd.f32 %v576, 1.0
  %v583 = vadd.f32 %v577, 1.0
  %v584 = vadd.f32 %v578, 1.0
  %591 = vrot.lane.b32.xlu0 %v579, 112
  %v592 = vpop.permute.xlu0 %591
  %593 = vrot.lane.b32.xlu0 %v580, 112
  %v594 = vpop.permute.xlu0 %593
  %595 = vrot.lane.b32.xlu0 %v581, 112
  %v596 = vpop.permute.xlu0 %595
  %597 = vrot.lane.b32.xlu0 %v582, 112
  %v598 = vpop.permute.xlu0 %597
  %599 = vrot.lane.b32.xlu0 %v583, 112
  %v600 = vpop.permute.xlu0 %599
  %601 = vrot.lane.b32.xlu0 %v584, 112
  %v602 = vpop.permute.xlu0 %601
  %v609 = vmul.f32 %v573, %v592
  %v610 = vmul.f32 %v574, %v594
  %v611 = vmul.f32 %v575, %v596
  %v612 = vmul.f32 %v576, %v598
  %v613 = vmul.f32 %v577, %v600
  %v614 = vmul.f32 %v578, %v602
  %v616 = vsel %vm156, %v609, 0
  %v619 = vsel %vm156, %v610, 0
  %v622 = vsel %vm156, %v611, 0
  %v625 = vsel %vm156, %v612, 0
  %v628 = vsel %vm156, %v613, 0
  %v631 = vsel %vm156, %v614, 0
  %633 = vmatpush.msra.mxu0 0.0
  %634 = vmatpush.msra.mxu0 0.0
  %635 = vmatpush.msra.mxu0 0.0
  %636 = vmatpush.msra.mxu0 0.0
  %637 = vmatpush.msra.mxu0 0.0
  %638 = vmatpush.msra.mxu0 0.0
  %639 = vmatpush.msra.mxu0 0.0
  %640 = vmatpush.msra.mxu0 0.0
  %641 = vmatpush.msra.mxu0 0.0
  %642 = vmatpush.msra.mxu0 0.0
  %643 = vmatpush.msra.mxu0 0.0
  %644 = vmatpush.msra.mxu0 0.0
  %645 = vmatpush.msra.mxu0 0.0
  %646 = vmatpush.msra.mxu0 0.0
  %647 = vmatpush.msra.mxu0 %v405
  %648 = vmatpush.msra.mxu0 %v404
  %649 = vmatmul.f32.gmra.mxu0 %v616
  %v650 = vpop.f32.mrf.mxu0
  %v651 = vadd.f32 0.0, %v650
  %652 = vmatmul.f32.gmra.mxu0 %v619
  %v653 = vpop.f32.mrf.mxu0
  %v654 = vadd.f32 0.0, %v653
  %655 = vmatmul.f32.gmra.mxu0 %v622
  %v656 = vpop.f32.mrf.mxu0
  %v657 = vadd.f32 0.0, %v656
  %658 = vmatmul.f32.gmra.mxu0 %v625
  %v659 = vpop.f32.mrf.mxu0
  %v660 = vadd.f32 0.0, %v659
  %661 = vmatmul.f32.gmra.mxu0 %v628
  %v662 = vpop.f32.mrf.mxu0
  %v663 = vadd.f32 0.0, %v662
  %664 = vmatmul.f32.gmra.mxu0 %v631
  %v665 = vpop.f32.mrf.mxu0
  %v666 = vadd.f32 0.0, %v665
  %667 = vdwg.mxu0
  %v668 = vadd.f32 %v651, %v389
  %v669 = vadd.f32 %v654, %v390
  %v670 = vadd.f32 %v657, %v391
  %v671 = vadd.f32 %v660, %v392
  %v672 = vadd.f32 %v663, %v393
  %v673 = vadd.f32 %v666, %v394
  %v674 = vadd.f32 %v395, %v651
  %v675 = vadd.f32 %v396, %v654
  %v676 = vadd.f32 %v397, %v657
  %v677 = vadd.f32 %v398, %v660
  %v678 = vadd.f32 %v399, %v663
  %v679 = vadd.f32 %v400, %v666
  %s680 = scalar_lea.vmem %s2, 64
  %v681 = vld [vmem:[%s680] sm:$0xff]
  %v682 = vld [vmem:[%s680 + $0x8] sm:$0xff]
  %v683 = vld [vmem:[%s680 + $0x10] sm:$0xff]
  %v684 = vld [vmem:[%s680 + $0x18] sm:$0xff]
  %s685 = scalar_lea.vmem %s3, 96
  %v686 = vld [vmem:[%s685] sm:$0xff]
  %v687 = vld [vmem:[%s685 + $0x8] sm:$0xff]
  %v688 = vld [vmem:[%s685 + $0x10] sm:$0xff]
  %v689 = vld [vmem:[%s685 + $0x18] sm:$0xff]
  %v690 = vld [vmem:[%s685 + $0x20] sm:$0xff]
  %v691 = vld [vmem:[%s685 + $0x28] sm:$0xff]
  %v693 = vsel %vm156, %v668, 0
  %v696 = vsel %vm156, %v669, 0
  %v699 = vsel %vm156, %v670, 0
  %v702 = vsel %vm156, %v671, 0
  %v705 = vsel %vm156, %v672, 0
  %v708 = vsel %vm156, %v673, 0
  %710 = vmatpush.msra.mxu0 0.0
  %711 = vmatpush.msra.mxu0 0.0
  %712 = vmatpush.msra.mxu0 0.0
  %713 = vmatpush.msra.mxu0 0.0
  %714 = vmatpush.msra.mxu0 0.0
  %715 = vmatpush.msra.mxu0 0.0
  %716 = vmatpush.msra.mxu0 0.0
  %717 = vmatpush.msra.mxu0 0.0
  %718 = vmatpush.msra.mxu0 0.0
  %719 = vmatpush.msra.mxu0 0.0
  %720 = vmatpush.msra.mxu0 0.0
  %721 = vmatpush.msra.mxu0 0.0
  %722 = vmatpush.msra.mxu0 0.0
  %723 = vmatpush.msra.mxu0 0.0
  %724 = vmatpush.msra.mxu0 %v682
  %725 = vmatpush.msra.mxu0 %v681
  %726 = vmatmul.f32.gmra.mxu0 %v693
  %v727 = vpop.f32.mrf.mxu0
  %v728 = vadd.f32 0.0, %v727
  %729 = vmatmul.f32.gmra.mxu0 %v696
  %v730 = vpop.f32.mrf.mxu0
  %v731 = vadd.f32 0.0, %v730
  %732 = vmatmul.f32.gmra.mxu0 %v699
  %v733 = vpop.f32.mrf.mxu0
  %v734 = vadd.f32 0.0, %v733
  %735 = vmatmul.f32.gmra.mxu0 %v702
  %v736 = vpop.f32.mrf.mxu0
  %v737 = vadd.f32 0.0, %v736
  %738 = vmatmul.f32.gmra.mxu0 %v705
  %v739 = vpop.f32.mrf.mxu0
  %v740 = vadd.f32 0.0, %v739
  %741 = vmatmul.f32.gmra.mxu0 %v708
  %v742 = vpop.f32.mrf.mxu0
  %v743 = vadd.f32 0.0, %v742
  %744 = vdwg.mxu0
  %751 = vrot.lane.b32.xlu0 %v728, 96
  %v752 = vpop.permute.xlu0 %751
  %753 = vrot.lane.b32.xlu0 %v731, 96
  %v754 = vpop.permute.xlu0 %753
  %755 = vrot.lane.b32.xlu0 %v734, 96
  %v756 = vpop.permute.xlu0 %755
  %757 = vrot.lane.b32.xlu0 %v737, 96
  %v758 = vpop.permute.xlu0 %757
  %759 = vrot.lane.b32.xlu0 %v740, 96
  %v760 = vpop.permute.xlu0 %759
  %761 = vrot.lane.b32.xlu0 %v743, 96
  %v762 = vpop.permute.xlu0 %761
  %v770 = vsel %vm228, %v686, 0
  %v773 = vsel %vm228, %v687, 0
  %v776 = vsel %vm228, %v688, 0
  %v779 = vsel %vm228, %v689, 0
  %v782 = vsel %vm228, %v690, 0
  %v785 = vsel %vm228, %v691, 0
  %787 = vmatpush.msra.mxu0 0.0
  %788 = vmatpush.msra.mxu0 0.0
  %789 = vmatpush.msra.mxu0 0.0
  %790 = vmatpush.msra.mxu0 0.0
  %791 = vmatpush.msra.mxu0 0.0
  %792 = vmatpush.msra.mxu0 0.0
  %793 = vmatpush.msra.mxu0 0.0
  %794 = vmatpush.msra.mxu0 0.0
  %795 = vmatpush.msra.mxu0 0.0
  %796 = vmatpush.msra.mxu0 0.0
  %797 = vmatpush.msra.mxu0 %v743
  %798 = vmatpush.msra.mxu0 %v740
  %799 = vmatpush.msra.mxu0 %v737
  %800 = vmatpush.msra.mxu0 %v734
  %801 = vmatpush.msra.mxu0 %v731
  %802 = vmatpush.msra.mxu0 %v728
  %803 = vmatmul.f32.gmra.mxu0 %v770
  %v804 = vpop.f32.mrf.mxu0
  %v805 = vadd.f32 %v752, %v804
  %806 = vmatmul.f32.gmra.mxu0 %v773
  %v807 = vpop.f32.mrf.mxu0
  %v808 = vadd.f32 %v754, %v807
  %809 = vmatmul.f32.gmra.mxu0 %v776
  %v810 = vpop.f32.mrf.mxu0
  %v811 = vadd.f32 %v756, %v810
  %812 = vmatmul.f32.gmra.mxu0 %v779
  %v813 = vpop.f32.mrf.mxu0
  %v814 = vadd.f32 %v758, %v813
  %815 = vmatmul.f32.gmra.mxu0 %v782
  %v816 = vpop.f32.mrf.mxu0
  %v817 = vadd.f32 %v760, %v816
  %818 = vmatmul.f32.gmra.mxu0 %v785
  %v819 = vpop.f32.mrf.mxu0
  %v820 = vadd.f32 %v762, %v819
  %821 = vdwg.mxu0
  %822 = vrot.lane.b32.xlu0 %v76, 64
  %v823 = vpop.permute.xlu0 %822
  %824 = vrot.lane.b32.xlu0 %v79, 64
  %v825 = vpop.permute.xlu0 %824
  %826 = vrot.lane.b32.xlu0 %v82, 64
  %v827 = vpop.permute.xlu0 %826
  %828 = vrot.lane.b32.xlu0 %v85, 64
  %v829 = vpop.permute.xlu0 %828
  %830 = vrot.lane.b32.xlu0 %v88, 64
  %v831 = vpop.permute.xlu0 %830
  %832 = vrot.lane.b32.xlu0 %v91, 64
  %v833 = vpop.permute.xlu0 %832
  %v840 = vadd.f32 %v805, %v823
  %v841 = vadd.f32 %v808, %v825
  %v842 = vadd.f32 %v811, %v827
  %v843 = vadd.f32 %v814, %v829
  %v844 = vadd.f32 %v817, %v831
  %v845 = vadd.f32 %v820, %v833
  %v846 = vtanh.pop %v840
  %v847 = vtanh.pop %v841
  %v848 = vtanh.pop %v842
  %v849 = vtanh.pop %v843
  %v850 = vtanh.pop %v844
  %v851 = vtanh.pop %v845
  %v852 = vadd.f32 %v846, 1.0
  %v853 = vadd.f32 %v847, 1.0
  %v854 = vadd.f32 %v848, 1.0
  %v855 = vadd.f32 %v849, 1.0
  %v856 = vadd.f32 %v850, 1.0
  %v857 = vadd.f32 %v851, 1.0
  %864 = vrot.lane.b32.xlu0 %v852, 112
  %v865 = vpop.permute.xlu0 %864
  %866 = vrot.lane.b32.xlu0 %v853, 112
  %v867 = vpop.permute.xlu0 %866
  %868 = vrot.lane.b32.xlu0 %v854, 112
  %v869 = vpop.permute.xlu0 %868
  %870 = vrot.lane.b32.xlu0 %v855, 112
  %v871 = vpop.permute.xlu0 %870
  %872 = vrot.lane.b32.xlu0 %v856, 112
  %v873 = vpop.permute.xlu0 %872
  %874 = vrot.lane.b32.xlu0 %v857, 112
  %v875 = vpop.permute.xlu0 %874
  %v882 = vmul.f32 %v846, %v865
  %v883 = vmul.f32 %v847, %v867
  %v884 = vmul.f32 %v848, %v869
  %v885 = vmul.f32 %v849, %v871
  %v886 = vmul.f32 %v850, %v873
  %v887 = vmul.f32 %v851, %v875
  %v889 = vsel %vm156, %v882, 0
  %v892 = vsel %vm156, %v883, 0
  %v895 = vsel %vm156, %v884, 0
  %v898 = vsel %vm156, %v885, 0
  %v901 = vsel %vm156, %v886, 0
  %v904 = vsel %vm156, %v887, 0
  %906 = vmatpush.msra.mxu0 0.0
  %907 = vmatpush.msra.mxu0 0.0
  %908 = vmatpush.msra.mxu0 0.0
  %909 = vmatpush.msra.mxu0 0.0
  %910 = vmatpush.msra.mxu0 0.0
  %911 = vmatpush.msra.mxu0 0.0
  %912 = vmatpush.msra.mxu0 0.0
  %913 = vmatpush.msra.mxu0 0.0
  %914 = vmatpush.msra.mxu0 0.0
  %915 = vmatpush.msra.mxu0 0.0
  %916 = vmatpush.msra.mxu0 0.0
  %917 = vmatpush.msra.mxu0 0.0
  %918 = vmatpush.msra.mxu0 0.0
  %919 = vmatpush.msra.mxu0 0.0
  %920 = vmatpush.msra.mxu0 %v684
  %921 = vmatpush.msra.mxu0 %v683
  %922 = vmatmul.f32.gmra.mxu0 %v889
  %v923 = vpop.f32.mrf.mxu0
  %v924 = vadd.f32 0.0, %v923
  %925 = vmatmul.f32.gmra.mxu0 %v892
  %v926 = vpop.f32.mrf.mxu0
  %v927 = vadd.f32 0.0, %v926
  %928 = vmatmul.f32.gmra.mxu0 %v895
  %v929 = vpop.f32.mrf.mxu0
  %v930 = vadd.f32 0.0, %v929
  %931 = vmatmul.f32.gmra.mxu0 %v898
  %v932 = vpop.f32.mrf.mxu0
  %v933 = vadd.f32 0.0, %v932
  %934 = vmatmul.f32.gmra.mxu0 %v901
  %v935 = vpop.f32.mrf.mxu0
  %v936 = vadd.f32 0.0, %v935
  %937 = vmatmul.f32.gmra.mxu0 %v904
  %v938 = vpop.f32.mrf.mxu0
  %v939 = vadd.f32 0.0, %v938
  %940 = vdwg.mxu0
  %v941 = vadd.f32 %v924, %v668
  %v942 = vadd.f32 %v927, %v669
  %v943 = vadd.f32 %v930, %v670
  %v944 = vadd.f32 %v933, %v671
  %v945 = vadd.f32 %v936, %v672
  %v946 = vadd.f32 %v939, %v673
  %v947 = vadd.f32 %v674, %v924
  %v948 = vadd.f32 %v675, %v927
  %v949 = vadd.f32 %v676, %v930
  %v950 = vadd.f32 %v677, %v933
  %v951 = vadd.f32 %v678, %v936
  %v952 = vadd.f32 %v679, %v939
  %s953 = scalar_lea.vmem %s2, 96
  %v954 = vld [vmem:[%s953] sm:$0xff]
  %v955 = vld [vmem:[%s953 + $0x8] sm:$0xff]
  %v956 = vld [vmem:[%s953 + $0x10] sm:$0xff]
  %v957 = vld [vmem:[%s953 + $0x18] sm:$0xff]
  %v959 = vsel %vm156, %v941, 0
  %v962 = vsel %vm156, %v942, 0
  %v965 = vsel %vm156, %v943, 0
  %v968 = vsel %vm156, %v944, 0
  %v971 = vsel %vm156, %v945, 0
  %v974 = vsel %vm156, %v946, 0
  %976 = vmatpush.msra.mxu0 0.0
  %977 = vmatpush.msra.mxu0 0.0
  %978 = vmatpush.msra.mxu0 0.0
  %979 = vmatpush.msra.mxu0 0.0
  %980 = vmatpush.msra.mxu0 0.0
  %981 = vmatpush.msra.mxu0 0.0
  %982 = vmatpush.msra.mxu0 0.0
  %983 = vmatpush.msra.mxu0 0.0
  %984 = vmatpush.msra.mxu0 0.0
  %985 = vmatpush.msra.mxu0 0.0
  %986 = vmatpush.msra.mxu0 0.0
  %987 = vmatpush.msra.mxu0 0.0
  %988 = vmatpush.msra.mxu0 0.0
  %989 = vmatpush.msra.mxu0 0.0
  %990 = vmatpush.msra.mxu0 %v955
  %991 = vmatpush.msra.mxu0 %v954
  %992 = vmatmul.f32.gmra.mxu0 %v959
  %v993 = vpop.f32.mrf.mxu0
  %v994 = vadd.f32 0.0, %v993
  %995 = vmatmul.f32.gmra.mxu0 %v962
  %v996 = vpop.f32.mrf.mxu0
  %v997 = vadd.f32 0.0, %v996
  %998 = vmatmul.f32.gmra.mxu0 %v965
  %v999 = vpop.f32.mrf.mxu0
  %v1000 = vadd.f32 0.0, %v999
  %1001 = vmatmul.f32.gmra.mxu0 %v968
  %v1002 = vpop.f32.mrf.mxu0
  %v1003 = vadd.f32 0.0, %v1002
  %1004 = vmatmul.f32.gmra.mxu0 %v971
  %v1005 = vpop.f32.mrf.mxu0
  %v1006 = vadd.f32 0.0, %v1005
  %1007 = vmatmul.f32.gmra.mxu0 %v974
  %v1008 = vpop.f32.mrf.mxu0
  %v1009 = vadd.f32 0.0, %v1008
  %1010 = vdwg.mxu0
  %1017 = vrot.lane.b32.xlu0 %v994, 96
  %v1018 = vpop.permute.xlu0 %1017
  %1019 = vrot.lane.b32.xlu0 %v997, 96
  %v1020 = vpop.permute.xlu0 %1019
  %1021 = vrot.lane.b32.xlu0 %v1000, 96
  %v1022 = vpop.permute.xlu0 %1021
  %1023 = vrot.lane.b32.xlu0 %v1003, 96
  %v1024 = vpop.permute.xlu0 %1023
  %1025 = vrot.lane.b32.xlu0 %v1006, 96
  %v1026 = vpop.permute.xlu0 %1025
  %1027 = vrot.lane.b32.xlu0 %v1009, 96
  %v1028 = vpop.permute.xlu0 %1027
  %1035 = vmatpush.msra.mxu0 0.0
  %1036 = vmatpush.msra.mxu0 0.0
  %1037 = vmatpush.msra.mxu0 0.0
  %1038 = vmatpush.msra.mxu0 0.0
  %1039 = vmatpush.msra.mxu0 0.0
  %1040 = vmatpush.msra.mxu0 0.0
  %1041 = vmatpush.msra.mxu0 0.0
  %1042 = vmatpush.msra.mxu0 0.0
  %1043 = vmatpush.msra.mxu0 0.0
  %1044 = vmatpush.msra.mxu0 0.0
  %1045 = vmatpush.msra.mxu0 %v1009
  %1046 = vmatpush.msra.mxu0 %v1006
  %1047 = vmatpush.msra.mxu0 %v1003
  %1048 = vmatpush.msra.mxu0 %v1000
  %1049 = vmatpush.msra.mxu0 %v997
  %1050 = vmatpush.msra.mxu0 %v994
  %1051 = vmatmul.f32.gmra.mxu0 %v230
  %v1052 = vpop.f32.mrf.mxu0
  %v1053 = vadd.f32 %v1018, %v1052
  %1054 = vmatmul.f32.gmra.mxu0 %v233
  %v1055 = vpop.f32.mrf.mxu0
  %v1056 = vadd.f32 %v1020, %v1055
  %1057 = vmatmul.f32.gmra.mxu0 %v236
  %v1058 = vpop.f32.mrf.mxu0
  %v1059 = vadd.f32 %v1022, %v1058
  %1060 = vmatmul.f32.gmra.mxu0 %v239
  %v1061 = vpop.f32.mrf.mxu0
  %v1062 = vadd.f32 %v1024, %v1061
  %1063 = vmatmul.f32.gmra.mxu0 %v242
  %v1064 = vpop.f32.mrf.mxu0
  %v1065 = vadd.f32 %v1026, %v1064
  %1066 = vmatmul.f32.gmra.mxu0 %v245
  %v1067 = vpop.f32.mrf.mxu0
  %v1068 = vadd.f32 %v1028, %v1067
  %1069 = vdwg.mxu0
  %1070 = vrot.lane.b32.xlu0 %v76, 32
  %v1071 = vpop.permute.xlu0 %1070
  %1072 = vrot.lane.b32.xlu0 %v79, 32
  %v1073 = vpop.permute.xlu0 %1072
  %1074 = vrot.lane.b32.xlu0 %v82, 32
  %v1075 = vpop.permute.xlu0 %1074
  %1076 = vrot.lane.b32.xlu0 %v85, 32
  %v1077 = vpop.permute.xlu0 %1076
  %1078 = vrot.lane.b32.xlu0 %v88, 32
  %v1079 = vpop.permute.xlu0 %1078
  %1080 = vrot.lane.b32.xlu0 %v91, 32
  %v1081 = vpop.permute.xlu0 %1080
  %v1088 = vadd.f32 %v1053, %v1071
  %v1089 = vadd.f32 %v1056, %v1073
  %v1090 = vadd.f32 %v1059, %v1075
  %v1091 = vadd.f32 %v1062, %v1077
  %v1092 = vadd.f32 %v1065, %v1079
  %v1093 = vadd.f32 %v1068, %v1081
  %v1094 = vtanh.pop %v1088
  %v1095 = vtanh.pop %v1089
  %v1096 = vtanh.pop %v1090
  %v1097 = vtanh.pop %v1091
  %v1098 = vtanh.pop %v1092
  %v1099 = vtanh.pop %v1093
  %v1100 = vadd.f32 %v1094, 1.0
  %v1101 = vadd.f32 %v1095, 1.0
  %v1102 = vadd.f32 %v1096, 1.0
  %v1103 = vadd.f32 %v1097, 1.0
  %v1104 = vadd.f32 %v1098, 1.0
  %v1105 = vadd.f32 %v1099, 1.0
  %1112 = vrot.lane.b32.xlu0 %v1100, 112
  %v1113 = vpop.permute.xlu0 %1112
  %1114 = vrot.lane.b32.xlu0 %v1101, 112
  %v1115 = vpop.permute.xlu0 %1114
  %1116 = vrot.lane.b32.xlu0 %v1102, 112
  %v1117 = vpop.permute.xlu0 %1116
  %1118 = vrot.lane.b32.xlu0 %v1103, 112
  %v1119 = vpop.permute.xlu0 %1118
  %1120 = vrot.lane.b32.xlu0 %v1104, 112
  %v1121 = vpop.permute.xlu0 %1120
  %1122 = vrot.lane.b32.xlu0 %v1105, 112
  %v1123 = vpop.permute.xlu0 %1122
  %v1130 = vmul.f32 %v1094, %v1113
  %v1131 = vmul.f32 %v1095, %v1115
  %v1132 = vmul.f32 %v1096, %v1117
  %v1133 = vmul.f32 %v1097, %v1119
  %v1134 = vmul.f32 %v1098, %v1121
  %v1135 = vmul.f32 %v1099, %v1123
  %v1137 = vsel %vm156, %v1130, 0
  %v1140 = vsel %vm156, %v1131, 0
  %v1143 = vsel %vm156, %v1132, 0
  %v1146 = vsel %vm156, %v1133, 0
  %v1149 = vsel %vm156, %v1134, 0
  %v1152 = vsel %vm156, %v1135, 0
  %1154 = vmatpush.msra.mxu0 0.0
  %1155 = vmatpush.msra.mxu0 0.0
  %1156 = vmatpush.msra.mxu0 0.0
  %1157 = vmatpush.msra.mxu0 0.0
  %1158 = vmatpush.msra.mxu0 0.0
  %1159 = vmatpush.msra.mxu0 0.0
  %1160 = vmatpush.msra.mxu0 0.0
  %1161 = vmatpush.msra.mxu0 0.0
  %1162 = vmatpush.msra.mxu0 0.0
  %1163 = vmatpush.msra.mxu0 0.0
  %1164 = vmatpush.msra.mxu0 0.0
  %1165 = vmatpush.msra.mxu0 0.0
  %1166 = vmatpush.msra.mxu0 0.0
  %1167 = vmatpush.msra.mxu0 0.0
  %1168 = vmatpush.msra.mxu0 %v957
  %1169 = vmatpush.msra.mxu0 %v956
  %1170 = vmatmul.f32.gmra.mxu0 %v1137
  %v1171 = vpop.f32.mrf.mxu0
  %v1172 = vadd.f32 0.0, %v1171
  %1173 = vmatmul.f32.gmra.mxu0 %v1140
  %v1174 = vpop.f32.mrf.mxu0
  %v1175 = vadd.f32 0.0, %v1174
  %1176 = vmatmul.f32.gmra.mxu0 %v1143
  %v1177 = vpop.f32.mrf.mxu0
  %v1178 = vadd.f32 0.0, %v1177
  %1179 = vmatmul.f32.gmra.mxu0 %v1146
  %v1180 = vpop.f32.mrf.mxu0
  %v1181 = vadd.f32 0.0, %v1180
  %1182 = vmatmul.f32.gmra.mxu0 %v1149
  %v1183 = vpop.f32.mrf.mxu0
  %v1184 = vadd.f32 0.0, %v1183
  %1185 = vmatmul.f32.gmra.mxu0 %v1152
  %v1186 = vpop.f32.mrf.mxu0
  %v1187 = vadd.f32 0.0, %v1186
  %1188 = vdwg.mxu0
  %v1189 = vadd.f32 %v1172, %v941
  %v1190 = vadd.f32 %v1175, %v942
  %v1191 = vadd.f32 %v1178, %v943
  %v1192 = vadd.f32 %v1181, %v944
  %v1193 = vadd.f32 %v1184, %v945
  %v1194 = vadd.f32 %v1187, %v946
  %v1195 = vadd.f32 %v947, %v1172
  %v1196 = vadd.f32 %v948, %v1175
  %v1197 = vadd.f32 %v949, %v1178
  %v1198 = vadd.f32 %v950, %v1181
  %v1199 = vadd.f32 %v951, %v1184
  %v1200 = vadd.f32 %v952, %v1187
  %s1201 = scalar_lea.vmem %s2, 128
  %v1202 = vld [vmem:[%s1201] sm:$0xff]
  %v1203 = vld [vmem:[%s1201 + $0x8] sm:$0xff]
  %v1204 = vld [vmem:[%s1201 + $0x10] sm:$0xff]
  %v1205 = vld [vmem:[%s1201 + $0x18] sm:$0xff]
  %v1207 = vsel %vm156, %v1189, 0
  %v1210 = vsel %vm156, %v1190, 0
  %v1213 = vsel %vm156, %v1191, 0
  %v1216 = vsel %vm156, %v1192, 0
  %v1219 = vsel %vm156, %v1193, 0
  %v1222 = vsel %vm156, %v1194, 0
  %1224 = vmatpush.msra.mxu0 0.0
  %1225 = vmatpush.msra.mxu0 0.0
  %1226 = vmatpush.msra.mxu0 0.0
  %1227 = vmatpush.msra.mxu0 0.0
  %1228 = vmatpush.msra.mxu0 0.0
  %1229 = vmatpush.msra.mxu0 0.0
  %1230 = vmatpush.msra.mxu0 0.0
  %1231 = vmatpush.msra.mxu0 0.0
  %1232 = vmatpush.msra.mxu0 0.0
  %1233 = vmatpush.msra.mxu0 0.0
  %1234 = vmatpush.msra.mxu0 0.0
  %1235 = vmatpush.msra.mxu0 0.0
  %1236 = vmatpush.msra.mxu0 0.0
  %1237 = vmatpush.msra.mxu0 0.0
  %1238 = vmatpush.msra.mxu0 %v1203
  %1239 = vmatpush.msra.mxu0 %v1202
  %1240 = vmatmul.f32.gmra.mxu0 %v1207
  %v1241 = vpop.f32.mrf.mxu0
  %v1242 = vadd.f32 0.0, %v1241
  %1243 = vmatmul.f32.gmra.mxu0 %v1210
  %v1244 = vpop.f32.mrf.mxu0
  %v1245 = vadd.f32 0.0, %v1244
  %1246 = vmatmul.f32.gmra.mxu0 %v1213
  %v1247 = vpop.f32.mrf.mxu0
  %v1248 = vadd.f32 0.0, %v1247
  %1249 = vmatmul.f32.gmra.mxu0 %v1216
  %v1250 = vpop.f32.mrf.mxu0
  %v1251 = vadd.f32 0.0, %v1250
  %1252 = vmatmul.f32.gmra.mxu0 %v1219
  %v1253 = vpop.f32.mrf.mxu0
  %v1254 = vadd.f32 0.0, %v1253
  %1255 = vmatmul.f32.gmra.mxu0 %v1222
  %v1256 = vpop.f32.mrf.mxu0
  %v1257 = vadd.f32 0.0, %v1256
  %1258 = vdwg.mxu0
  %1265 = vrot.lane.b32.xlu0 %v1242, 96
  %v1266 = vpop.permute.xlu0 %1265
  %1267 = vrot.lane.b32.xlu0 %v1245, 96
  %v1268 = vpop.permute.xlu0 %1267
  %1269 = vrot.lane.b32.xlu0 %v1248, 96
  %v1270 = vpop.permute.xlu0 %1269
  %1271 = vrot.lane.b32.xlu0 %v1251, 96
  %v1272 = vpop.permute.xlu0 %1271
  %1273 = vrot.lane.b32.xlu0 %v1254, 96
  %v1274 = vpop.permute.xlu0 %1273
  %1275 = vrot.lane.b32.xlu0 %v1257, 96
  %v1276 = vpop.permute.xlu0 %1275
  %1283 = vmatpush.msra.mxu0 0.0
  %1284 = vmatpush.msra.mxu0 0.0
  %1285 = vmatpush.msra.mxu0 0.0
  %1286 = vmatpush.msra.mxu0 0.0
  %1287 = vmatpush.msra.mxu0 0.0
  %1288 = vmatpush.msra.mxu0 0.0
  %1289 = vmatpush.msra.mxu0 0.0
  %1290 = vmatpush.msra.mxu0 0.0
  %1291 = vmatpush.msra.mxu0 0.0
  %1292 = vmatpush.msra.mxu0 0.0
  %1293 = vmatpush.msra.mxu0 %v1257
  %1294 = vmatpush.msra.mxu0 %v1254
  %1295 = vmatpush.msra.mxu0 %v1251
  %1296 = vmatpush.msra.mxu0 %v1248
  %1297 = vmatpush.msra.mxu0 %v1245
  %1298 = vmatpush.msra.mxu0 %v1242
  %1299 = vmatmul.f32.gmra.mxu0 %v491
  %v1300 = vpop.f32.mrf.mxu0
  %v1301 = vadd.f32 %v1266, %v1300
  %1302 = vmatmul.f32.gmra.mxu0 %v494
  %v1303 = vpop.f32.mrf.mxu0
  %v1304 = vadd.f32 %v1268, %v1303
  %1305 = vmatmul.f32.gmra.mxu0 %v497
  %v1306 = vpop.f32.mrf.mxu0
  %v1307 = vadd.f32 %v1270, %v1306
  %1308 = vmatmul.f32.gmra.mxu0 %v500
  %v1309 = vpop.f32.mrf.mxu0
  %v1310 = vadd.f32 %v1272, %v1309
  %1311 = vmatmul.f32.gmra.mxu0 %v503
  %v1312 = vpop.f32.mrf.mxu0
  %v1313 = vadd.f32 %v1274, %v1312
  %1314 = vmatmul.f32.gmra.mxu0 %v506
  %v1315 = vpop.f32.mrf.mxu0
  %v1316 = vadd.f32 %v1276, %v1315
  %1317 = vdwg.mxu0
  %v1318 = vadd.f32 %v1301, %v111
  %v1319 = vadd.f32 %v1304, %v114
  %v1320 = vadd.f32 %v1307, %v117
  %v1321 = vadd.f32 %v1310, %v120
  %v1322 = vadd.f32 %v1313, %v123
  %v1323 = vadd.f32 %v1316, %v126
  %v1324 = vtanh.pop %v1318
  %v1325 = vtanh.pop %v1319
  %v1326 = vtanh.pop %v1320
  %v1327 = vtanh.pop %v1321
  %v1328 = vtanh.pop %v1322
  %v1329 = vtanh.pop %v1323
  %v1330 = vadd.f32 %v1324, 1.0
  %v1331 = vadd.f32 %v1325, 1.0
  %v1332 = vadd.f32 %v1326, 1.0
  %v1333 = vadd.f32 %v1327, 1.0
  %v1334 = vadd.f32 %v1328, 1.0
  %v1335 = vadd.f32 %v1329, 1.0
  %1342 = vrot.lane.b32.xlu0 %v1330, 112
  %v1343 = vpop.permute.xlu0 %1342
  %1344 = vrot.lane.b32.xlu0 %v1331, 112
  %v1345 = vpop.permute.xlu0 %1344
  %1346 = vrot.lane.b32.xlu0 %v1332, 112
  %v1347 = vpop.permute.xlu0 %1346
  %1348 = vrot.lane.b32.xlu0 %v1333, 112
  %v1349 = vpop.permute.xlu0 %1348
  %1350 = vrot.lane.b32.xlu0 %v1334, 112
  %v1351 = vpop.permute.xlu0 %1350
  %1352 = vrot.lane.b32.xlu0 %v1335, 112
  %v1353 = vpop.permute.xlu0 %1352
  %v1360 = vmul.f32 %v1324, %v1343
  %v1361 = vmul.f32 %v1325, %v1345
  %v1362 = vmul.f32 %v1326, %v1347
  %v1363 = vmul.f32 %v1327, %v1349
  %v1364 = vmul.f32 %v1328, %v1351
  %v1365 = vmul.f32 %v1329, %v1353
  %v1367 = vsel %vm156, %v1360, 0
  %v1370 = vsel %vm156, %v1361, 0
  %v1373 = vsel %vm156, %v1362, 0
  %v1376 = vsel %vm156, %v1363, 0
  %v1379 = vsel %vm156, %v1364, 0
  %v1382 = vsel %vm156, %v1365, 0
  %1384 = vmatpush.msra.mxu0 0.0
  %1385 = vmatpush.msra.mxu0 0.0
  %1386 = vmatpush.msra.mxu0 0.0
  %1387 = vmatpush.msra.mxu0 0.0
  %1388 = vmatpush.msra.mxu0 0.0
  %1389 = vmatpush.msra.mxu0 0.0
  %1390 = vmatpush.msra.mxu0 0.0
  %1391 = vmatpush.msra.mxu0 0.0
  %1392 = vmatpush.msra.mxu0 0.0
  %1393 = vmatpush.msra.mxu0 0.0
  %1394 = vmatpush.msra.mxu0 0.0
  %1395 = vmatpush.msra.mxu0 0.0
  %1396 = vmatpush.msra.mxu0 0.0
  %1397 = vmatpush.msra.mxu0 0.0
  %1398 = vmatpush.msra.mxu0 %v1205
  %1399 = vmatpush.msra.mxu0 %v1204
  %1400 = vmatmul.f32.gmra.mxu0 %v1367
  %v1401 = vpop.f32.mrf.mxu0
  %v1402 = vadd.f32 0.0, %v1401
  %1403 = vmatmul.f32.gmra.mxu0 %v1370
  %v1404 = vpop.f32.mrf.mxu0
  %v1405 = vadd.f32 0.0, %v1404
  %1406 = vmatmul.f32.gmra.mxu0 %v1373
  %v1407 = vpop.f32.mrf.mxu0
  %v1408 = vadd.f32 0.0, %v1407
  %1409 = vmatmul.f32.gmra.mxu0 %v1376
  %v1410 = vpop.f32.mrf.mxu0
  %v1411 = vadd.f32 0.0, %v1410
  %1412 = vmatmul.f32.gmra.mxu0 %v1379
  %v1413 = vpop.f32.mrf.mxu0
  %v1414 = vadd.f32 0.0, %v1413
  %1415 = vmatmul.f32.gmra.mxu0 %v1382
  %v1416 = vpop.f32.mrf.mxu0
  %v1417 = vadd.f32 0.0, %v1416
  %1418 = vdwg.mxu0
  %v1419 = vadd.f32 %v1402, %v1189
  %v1420 = vadd.f32 %v1405, %v1190
  %v1421 = vadd.f32 %v1408, %v1191
  %v1422 = vadd.f32 %v1411, %v1192
  %v1423 = vadd.f32 %v1414, %v1193
  %v1424 = vadd.f32 %v1417, %v1194
  %v1425 = vadd.f32 %v1195, %v1402
  %v1426 = vadd.f32 %v1196, %v1405
  %v1427 = vadd.f32 %v1197, %v1408
  %v1428 = vadd.f32 %v1198, %v1411
  %v1429 = vadd.f32 %v1199, %v1414
  %v1430 = vadd.f32 %v1200, %v1417
  %s1431 = scalar_lea.vmem %s2, 160
  %v1432 = vld [vmem:[%s1431] sm:$0xff]
  %v1433 = vld [vmem:[%s1431 + $0x8] sm:$0xff]
  %v1434 = vld [vmem:[%s1431 + $0x10] sm:$0xff]
  %v1435 = vld [vmem:[%s1431 + $0x18] sm:$0xff]
  %v1437 = vsel %vm156, %v1419, 0
  %v1440 = vsel %vm156, %v1420, 0
  %v1443 = vsel %vm156, %v1421, 0
  %v1446 = vsel %vm156, %v1422, 0
  %v1449 = vsel %vm156, %v1423, 0
  %v1452 = vsel %vm156, %v1424, 0
  %1454 = vmatpush.msra.mxu0 0.0
  %1455 = vmatpush.msra.mxu0 0.0
  %1456 = vmatpush.msra.mxu0 0.0
  %1457 = vmatpush.msra.mxu0 0.0
  %1458 = vmatpush.msra.mxu0 0.0
  %1459 = vmatpush.msra.mxu0 0.0
  %1460 = vmatpush.msra.mxu0 0.0
  %1461 = vmatpush.msra.mxu0 0.0
  %1462 = vmatpush.msra.mxu0 0.0
  %1463 = vmatpush.msra.mxu0 0.0
  %1464 = vmatpush.msra.mxu0 0.0
  %1465 = vmatpush.msra.mxu0 0.0
  %1466 = vmatpush.msra.mxu0 0.0
  %1467 = vmatpush.msra.mxu0 0.0
  %1468 = vmatpush.msra.mxu0 %v1433
  %1469 = vmatpush.msra.mxu0 %v1432
  %1470 = vmatmul.f32.gmra.mxu0 %v1437
  %v1471 = vpop.f32.mrf.mxu0
  %v1472 = vadd.f32 0.0, %v1471
  %1473 = vmatmul.f32.gmra.mxu0 %v1440
  %v1474 = vpop.f32.mrf.mxu0
  %v1475 = vadd.f32 0.0, %v1474
  %1476 = vmatmul.f32.gmra.mxu0 %v1443
  %v1477 = vpop.f32.mrf.mxu0
  %v1478 = vadd.f32 0.0, %v1477
  %1479 = vmatmul.f32.gmra.mxu0 %v1446
  %v1480 = vpop.f32.mrf.mxu0
  %v1481 = vadd.f32 0.0, %v1480
  %1482 = vmatmul.f32.gmra.mxu0 %v1449
  %v1483 = vpop.f32.mrf.mxu0
  %v1484 = vadd.f32 0.0, %v1483
  %1485 = vmatmul.f32.gmra.mxu0 %v1452
  %v1486 = vpop.f32.mrf.mxu0
  %v1487 = vadd.f32 0.0, %v1486
  %1488 = vdwg.mxu0
  %1495 = vrot.lane.b32.xlu0 %v1472, 96
  %v1496 = vpop.permute.xlu0 %1495
  %1497 = vrot.lane.b32.xlu0 %v1475, 96
  %v1498 = vpop.permute.xlu0 %1497
  %1499 = vrot.lane.b32.xlu0 %v1478, 96
  %v1500 = vpop.permute.xlu0 %1499
  %1501 = vrot.lane.b32.xlu0 %v1481, 96
  %v1502 = vpop.permute.xlu0 %1501
  %1503 = vrot.lane.b32.xlu0 %v1484, 96
  %v1504 = vpop.permute.xlu0 %1503
  %1505 = vrot.lane.b32.xlu0 %v1487, 96
  %v1506 = vpop.permute.xlu0 %1505
  %1513 = vmatpush.msra.mxu0 0.0
  %1514 = vmatpush.msra.mxu0 0.0
  %1515 = vmatpush.msra.mxu0 0.0
  %1516 = vmatpush.msra.mxu0 0.0
  %1517 = vmatpush.msra.mxu0 0.0
  %1518 = vmatpush.msra.mxu0 0.0
  %1519 = vmatpush.msra.mxu0 0.0
  %1520 = vmatpush.msra.mxu0 0.0
  %1521 = vmatpush.msra.mxu0 0.0
  %1522 = vmatpush.msra.mxu0 0.0
  %1523 = vmatpush.msra.mxu0 %v1487
  %1524 = vmatpush.msra.mxu0 %v1484
  %1525 = vmatpush.msra.mxu0 %v1481
  %1526 = vmatpush.msra.mxu0 %v1478
  %1527 = vmatpush.msra.mxu0 %v1475
  %1528 = vmatpush.msra.mxu0 %v1472
  %1529 = vmatmul.f32.gmra.mxu0 %v770
  %v1530 = vpop.f32.mrf.mxu0
  %v1531 = vadd.f32 %v1496, %v1530
  %1532 = vmatmul.f32.gmra.mxu0 %v773
  %v1533 = vpop.f32.mrf.mxu0
  %v1534 = vadd.f32 %v1498, %v1533
  %1535 = vmatmul.f32.gmra.mxu0 %v776
  %v1536 = vpop.f32.mrf.mxu0
  %v1537 = vadd.f32 %v1500, %v1536
  %1538 = vmatmul.f32.gmra.mxu0 %v779
  %v1539 = vpop.f32.mrf.mxu0
  %v1540 = vadd.f32 %v1502, %v1539
  %1541 = vmatmul.f32.gmra.mxu0 %v782
  %v1542 = vpop.f32.mrf.mxu0
  %v1543 = vadd.f32 %v1504, %v1542
  %1544 = vmatmul.f32.gmra.mxu0 %v785
  %v1545 = vpop.f32.mrf.mxu0
  %v1546 = vadd.f32 %v1506, %v1545
  %1547 = vdwg.mxu0
  %1548 = vrot.lane.b32.xlu0 %v111, 96
  %v1549 = vpop.permute.xlu0 %1548
  %1550 = vrot.lane.b32.xlu0 %v114, 96
  %v1551 = vpop.permute.xlu0 %1550
  %1552 = vrot.lane.b32.xlu0 %v117, 96
  %v1553 = vpop.permute.xlu0 %1552
  %1554 = vrot.lane.b32.xlu0 %v120, 96
  %v1555 = vpop.permute.xlu0 %1554
  %1556 = vrot.lane.b32.xlu0 %v123, 96
  %v1557 = vpop.permute.xlu0 %1556
  %1558 = vrot.lane.b32.xlu0 %v126, 96
  %v1559 = vpop.permute.xlu0 %1558
  %v1566 = vadd.f32 %v1531, %v1549
  %v1567 = vadd.f32 %v1534, %v1551
  %v1568 = vadd.f32 %v1537, %v1553
  %v1569 = vadd.f32 %v1540, %v1555
  %v1570 = vadd.f32 %v1543, %v1557
  %v1571 = vadd.f32 %v1546, %v1559
  %v1572 = vtanh.pop %v1566
  %v1573 = vtanh.pop %v1567
  %v1574 = vtanh.pop %v1568
  %v1575 = vtanh.pop %v1569
  %v1576 = vtanh.pop %v1570
  %v1577 = vtanh.pop %v1571
  %v1578 = vadd.f32 %v1572, 1.0
  %v1579 = vadd.f32 %v1573, 1.0
  %v1580 = vadd.f32 %v1574, 1.0
  %v1581 = vadd.f32 %v1575, 1.0
  %v1582 = vadd.f32 %v1576, 1.0
  %v1583 = vadd.f32 %v1577, 1.0
  %1590 = vrot.lane.b32.xlu0 %v1578, 112
  %v1591 = vpop.permute.xlu0 %1590
  %1592 = vrot.lane.b32.xlu0 %v1579, 112
  %v1593 = vpop.permute.xlu0 %1592
  %1594 = vrot.lane.b32.xlu0 %v1580, 112
  %v1595 = vpop.permute.xlu0 %1594
  %1596 = vrot.lane.b32.xlu0 %v1581, 112
  %v1597 = vpop.permute.xlu0 %1596
  %1598 = vrot.lane.b32.xlu0 %v1582, 112
  %v1599 = vpop.permute.xlu0 %1598
  %1600 = vrot.lane.b32.xlu0 %v1583, 112
  %v1601 = vpop.permute.xlu0 %1600
  %v1608 = vmul.f32 %v1572, %v1591
  %v1609 = vmul.f32 %v1573, %v1593
  %v1610 = vmul.f32 %v1574, %v1595
  %v1611 = vmul.f32 %v1575, %v1597
  %v1612 = vmul.f32 %v1576, %v1599
  %v1613 = vmul.f32 %v1577, %v1601
  %v1615 = vsel %vm156, %v1608, 0
  %v1618 = vsel %vm156, %v1609, 0
  %v1621 = vsel %vm156, %v1610, 0
  %v1624 = vsel %vm156, %v1611, 0
  %v1627 = vsel %vm156, %v1612, 0
  %v1630 = vsel %vm156, %v1613, 0
  %1632 = vmatpush.msra.mxu0 0.0
  %1633 = vmatpush.msra.mxu0 0.0
  %1634 = vmatpush.msra.mxu0 0.0
  %1635 = vmatpush.msra.mxu0 0.0
  %1636 = vmatpush.msra.mxu0 0.0
  %1637 = vmatpush.msra.mxu0 0.0
  %1638 = vmatpush.msra.mxu0 0.0
  %1639 = vmatpush.msra.mxu0 0.0
  %1640 = vmatpush.msra.mxu0 0.0
  %1641 = vmatpush.msra.mxu0 0.0
  %1642 = vmatpush.msra.mxu0 0.0
  %1643 = vmatpush.msra.mxu0 0.0
  %1644 = vmatpush.msra.mxu0 0.0
  %1645 = vmatpush.msra.mxu0 0.0
  %1646 = vmatpush.msra.mxu0 %v1435
  %1647 = vmatpush.msra.mxu0 %v1434
  %1648 = vmatmul.f32.gmra.mxu0 %v1615
  %v1649 = vpop.f32.mrf.mxu0
  %v1650 = vadd.f32 0.0, %v1649
  %1651 = vmatmul.f32.gmra.mxu0 %v1618
  %v1652 = vpop.f32.mrf.mxu0
  %v1653 = vadd.f32 0.0, %v1652
  %1654 = vmatmul.f32.gmra.mxu0 %v1621
  %v1655 = vpop.f32.mrf.mxu0
  %v1656 = vadd.f32 0.0, %v1655
  %1657 = vmatmul.f32.gmra.mxu0 %v1624
  %v1658 = vpop.f32.mrf.mxu0
  %v1659 = vadd.f32 0.0, %v1658
  %1660 = vmatmul.f32.gmra.mxu0 %v1627
  %v1661 = vpop.f32.mrf.mxu0
  %v1662 = vadd.f32 0.0, %v1661
  %1663 = vmatmul.f32.gmra.mxu0 %v1630
  %v1664 = vpop.f32.mrf.mxu0
  %v1665 = vadd.f32 0.0, %v1664
  %1666 = vdwg.mxu0
  %v1667 = vadd.f32 %v1425, %v1650
  %v1668 = vadd.f32 %v1426, %v1653
  %v1669 = vadd.f32 %v1427, %v1656
  %v1670 = vadd.f32 %v1428, %v1659
  %v1671 = vadd.f32 %v1429, %v1662
  %v1672 = vadd.f32 %v1430, %v1665
  %s1673 = scalar_lea.vmem %s2, 192
  %v1674 = vld [vmem:[%s1673] sm:$0xff]
  %v1675 = vld [vmem:[%s1673 + $0x8] sm:$0xff]
  %v1676 = vld [vmem:[%s1673 + $0x10] sm:$0xff]
  %v1677 = vmax.f32 %v1667, 0.0
  %v1678 = vmax.f32 %v1668, 0.0
  %v1679 = vmax.f32 %v1669, 0.0
  %v1680 = vmax.f32 %v1670, 0.0
  %v1681 = vmax.f32 %v1671, 0.0
  %v1682 = vmax.f32 %v1672, 0.0
  %v1683 = vperm.slane %v1676, 0
  %1690 = vrot.lane.b32.xlu0 %v1677, 112
  %v1691 = vpop.permute.xlu0 %1690
  %1692 = vrot.lane.b32.xlu0 %v1678, 112
  %v1693 = vpop.permute.xlu0 %1692
  %1694 = vrot.lane.b32.xlu0 %v1679, 112
  %v1695 = vpop.permute.xlu0 %1694
  %1696 = vrot.lane.b32.xlu0 %v1680, 112
  %v1697 = vpop.permute.xlu0 %1696
  %1698 = vrot.lane.b32.xlu0 %v1681, 112
  %v1699 = vpop.permute.xlu0 %1698
  %1700 = vrot.lane.b32.xlu0 %v1682, 112
  %v1701 = vpop.permute.xlu0 %1700
  %v1702 = vsel %vm156, %v1691, 0
  %v1704 = vsel %vm156, %v1693, 0
  %v1706 = vsel %vm156, %v1695, 0
  %v1708 = vsel %vm156, %v1697, 0
  %v1710 = vsel %vm156, %v1699, 0
  %v1712 = vsel %vm156, %v1701, 0
  %1714 = vmatpush.msra.mxu0 0.0
  %1715 = vmatpush.msra.mxu0 0.0
  %1716 = vmatpush.msra.mxu0 0.0
  %1717 = vmatpush.msra.mxu0 0.0
  %1718 = vmatpush.msra.mxu0 0.0
  %1719 = vmatpush.msra.mxu0 0.0
  %1720 = vmatpush.msra.mxu0 0.0
  %1721 = vmatpush.msra.mxu0 0.0
  %1722 = vmatpush.msra.mxu0 0.0
  %1723 = vmatpush.msra.mxu0 0.0
  %1724 = vmatpush.msra.mxu0 0.0
  %1725 = vmatpush.msra.mxu0 0.0
  %1726 = vmatpush.msra.mxu0 0.0
  %1727 = vmatpush.msra.mxu0 0.0
  %1728 = vmatpush.msra.mxu0 %v1675
  %1729 = vmatpush.msra.mxu0 %v1674
  %1730 = vmatmul.f32.gmra.mxu0 %v1702
  %v1731 = vpop.f32.mrf.mxu0
  %v1732 = vadd.f32 %v1683, %v1731
  %1733 = vmatmul.f32.gmra.mxu0 %v1704
  %v1734 = vpop.f32.mrf.mxu0
  %v1735 = vadd.f32 %v1683, %v1734
  %1736 = vmatmul.f32.gmra.mxu0 %v1706
  %v1737 = vpop.f32.mrf.mxu0
  %v1738 = vadd.f32 %v1683, %v1737
  %1739 = vmatmul.f32.gmra.mxu0 %v1708
  %v1740 = vpop.f32.mrf.mxu0
  %v1741 = vadd.f32 %v1683, %v1740
  %1742 = vmatmul.f32.gmra.mxu0 %v1710
  %v1743 = vpop.f32.mrf.mxu0
  %v1744 = vadd.f32 %v1683, %v1743
  %1745 = vmatmul.f32.gmra.mxu0 %v1712
  %v1746 = vpop.f32.mrf.mxu0
  %v1747 = vadd.f32 %v1683, %v1746
  %1748 = vdwg.mxu0
  %v1749 = vmax.f32 %v1732, 0.0
  %v1750 = vmax.f32 %v1735, 0.0
  %v1751 = vmax.f32 %v1738, 0.0
  %v1752 = vmax.f32 %v1741, 0.0
  %v1753 = vmax.f32 %v1744, 0.0
  %v1754 = vmax.f32 %v1747, 0.0
  %1757 = vrot.lane.b32.xlu0 %v1674, 96
  %v1758 = vpop.permute.xlu0 %1757
  %1759 = vrot.lane.b32.xlu0 %v1675, 96
  %v1760 = vpop.permute.xlu0 %1759
  %1764 = vrot.lane.b32.xlu0 %v1683, 96
  %v1765 = vpop.permute.xlu0 %1764
  %v1768 = vsel %vm156, %v1749, 0
  %v1771 = vsel %vm156, %v1750, 0
  %v1774 = vsel %vm156, %v1751, 0
  %v1777 = vsel %vm156, %v1752, 0
  %v1780 = vsel %vm156, %v1753, 0
  %v1783 = vsel %vm156, %v1754, 0
  %1785 = vmatpush.msra.mxu0 0.0
  %1786 = vmatpush.msra.mxu0 0.0
  %1787 = vmatpush.msra.mxu0 0.0
  %1788 = vmatpush.msra.mxu0 0.0
  %1789 = vmatpush.msra.mxu0 0.0
  %1790 = vmatpush.msra.mxu0 0.0
  %1791 = vmatpush.msra.mxu0 0.0
  %1792 = vmatpush.msra.mxu0 0.0
  %1793 = vmatpush.msra.mxu0 0.0
  %1794 = vmatpush.msra.mxu0 0.0
  %1795 = vmatpush.msra.mxu0 0.0
  %1796 = vmatpush.msra.mxu0 0.0
  %1797 = vmatpush.msra.mxu0 0.0
  %1798 = vmatpush.msra.mxu0 0.0
  %1799 = vmatpush.msra.mxu0 %v1760
  %1800 = vmatpush.msra.mxu0 %v1758
  %1801 = vmatmul.f32.gmra.mxu0 %v1768
  %v1802 = vpop.f32.mrf.mxu0
  %v1803 = vadd.f32 %v1765, %v1802
  %1804 = vmatmul.f32.gmra.mxu0 %v1771
  %v1805 = vpop.f32.mrf.mxu0
  %v1806 = vadd.f32 %v1765, %v1805
  %1807 = vmatmul.f32.gmra.mxu0 %v1774
  %v1808 = vpop.f32.mrf.mxu0
  %v1809 = vadd.f32 %v1765, %v1808
  %1810 = vmatmul.f32.gmra.mxu0 %v1777
  %v1811 = vpop.f32.mrf.mxu0
  %v1812 = vadd.f32 %v1765, %v1811
  %1813 = vmatmul.f32.gmra.mxu0 %v1780
  %v1814 = vpop.f32.mrf.mxu0
  %v1815 = vadd.f32 %v1765, %v1814
  %1816 = vmatmul.f32.gmra.mxu0 %v1783
  %v1817 = vpop.f32.mrf.mxu0
  %v1818 = vadd.f32 %v1765, %v1817
  %1819 = vdwg.mxu0
  %vm1820 = vcmask 261120
  %1821 = vst.msk [vmem:[%s4] sm:$0xff] %vm1820, %v1803
  %1822 = vst.msk [vmem:[%s4 + $0x8] sm:$0xff] %vm1820, %v1806
  %1823 = vst.msk [vmem:[%s4 + $0x10] sm:$0xff] %vm1820, %v1809
  %1824 = vst.msk [vmem:[%s4 + $0x18] sm:$0xff] %vm1820, %v1812
  %1825 = vst.msk [vmem:[%s4 + $0x20] sm:$0xff] %vm1820, %v1815
  %1826 = vst.msk [vmem:[%s4 + $0x28] sm:$0xff] %vm1820, %v1818
  // Predicated region
  $region18: #{wavenet_forward.1} parent=0 // pred_check
    _
  $region19: #{wavenet_forward.1} parent=0 // pred_check_branch
    %1828 = sbr.rel (0) target = $region21
  $region20: #{wavenet_forward.1} parent=0 // pred_region
    _
  $region21: #{wavenet_forward.1} parent=0 // pred_fallthru
    _
  // Predicated region
  $region22: #{wavenet_forward.1} parent=0 // pred_check
    _
  $region23: #{wavenet_forward.1} parent=0 // pred_check_branch
    %1830 = sbr.rel (0) target = $region25
  $region24: #{wavenet_forward.1} parent=0 // pred_region
    _
  $region25: #{wavenet_forward.1} parent=0 // pred_fallthru
    _

</llo_original>
